<compile_context>
chip_gen: v7x
topology: tpu7x:2x2x1
jax: 0.10.0
libtpu: 0.0.40
codegen_flags: <defaults>
</compile_context>

<pallas_src>
import numpy as np

import jax
import jax.numpy as jnp
from jax.experimental import pallas as pl
from jax.experimental.pallas import tpu as pltpu

STATE_DIM = 8
IMG_H = IMG_W = 16
IMG_C = 4
C1, C2 = 8, 16                  # conv output channels
H1 = W1 = IMG_H // 2            # 8  : conv1 output spatial
H2 = W2 = IMG_H // 4            # 4  : conv2 output spatial
ROW1 = IMG_W * IMG_C            # 64 lanes per image row        (w, c)
ROW2 = W1 * C1                  # 64 lanes per conv1-output row (w, c)
FC1_IN_IMG = C2 * H2 * W2       # 256
FC1_OUT = 64


# ------------------------------ fused kernel ------------------------------- #
def _critic_kernel(state_ref, img_ref,
                   ws_ref, bs_ref,
                   w1t_ref, w1m_ref, b1_ref,
                   w2_ref, b2_ref,
                   wf1s_ref, wf1i_ref, bf1_ref,
                   wf2_ref, bf2_ref,
                   out_ref, a1_ref):
    f32, bf16 = jnp.float32, jnp.bfloat16
    bt = out_ref.shape[0]

    # ---- state_fc + ReLU ----------------------------------------------------
    s = jnp.maximum(
        jnp.dot(state_ref[...], ws_ref[...], preferred_element_type=f32)
        + bs_ref[...], 0.0)

    # ---- conv1 (stride-2 3x3), banded by output row, + ReLU ------------------
    # a1_ref is an NHWC slab (bt, 64 + 8*64); lanes [0,64) are the zero pad row
    # that conv2's top output row reads through.
    b1 = b1_ref[...]
    a1_ref[:, 0:ROW2] = jnp.zeros((bt, ROW2), bf16)
    # output row 0: only input rows {0, 1} contribute (top image pad folded in)
    acc = jnp.dot(img_ref[:, 0:2 * ROW1].astype(bf16), w1t_ref[...],
                  preferred_element_type=f32) + b1
    a1_ref[:, ROW2:2 * ROW2] = jnp.maximum(acc, 0.0).astype(bf16)
    # output rows 1..7: input rows {2r-1, 2r, 2r+1} = 192 contiguous lanes
    for r in range(1, H1):
        lo = (2 * r - 1) * ROW1
        acc = jnp.dot(img_ref[:, lo:lo + 3 * ROW1].astype(bf16), w1m_ref[...],
                      preferred_element_type=f32) + b1
        a1_ref[:, (r + 1) * ROW2:(r + 2) * ROW2] = jnp.maximum(acc, 0.0).astype(bf16)

    # ---- conv2 (banded) + ReLU, streamed straight into fc1's image part ------
    b2 = b2_ref[...]
    h = (jnp.dot(s.astype(bf16), wf1s_ref[...], preferred_element_type=f32)
         + bf1_ref[...])
    for r in range(H2):
        lo = 2 * r * ROW2                       # 128-aligned slice of padded slab
        band = jnp.maximum(
            jnp.dot(a1_ref[:, lo:lo + 3 * ROW2], w2_ref[...],
                    preferred_element_type=f32) + b2, 0.0).astype(bf16)
        h = h + jnp.dot(band, wf1i_ref[r * 64:(r + 1) * 64, :],
                        preferred_element_type=f32)
    h = jnp.maximum(h, 0.0)                     # fc1 ReLU (128 lanes, cols 64+ are 0)

    # ---- fc2 (128 output lanes -> unmasked lane-dense store) -----------------
    out_ref[...] = (jnp.dot(h.astype(bf16), wf2_ref[...],
                            preferred_element_type=f32) + bf2_ref[...])


# ---------------------- init-time weight preprocessing --------------------- #
def _conv1_band_weights(wc1, bc1):
    """Fold Conv2d(4->8, k3, s2, p1) on an NHWC-flattened 16x16x4 image into
    per-output-row band matrices (columns ordered (ow, oc)):
      w1m (192, 64): shared band for output rows 1..7  (taps ki=0,1,2)
      w1t (128, 64): edge band for output row 0        (taps ki=1,2)
    Left/right zero padding == absent taps."""
    w = np.asarray(wc1, np.float32)             # (C1, IMG_C, 3, 3) OIHW
    w1m = np.zeros((3 * ROW1, W1 * C1), np.float32)
    w1t = np.zeros((2 * ROW1, W1 * C1), np.float32)
    for ow in range(W1):
        for oc in range(C1):
            col = ow * C1 + oc
            for kj in range(3):
                wi = 2 * ow - 1 + kj
                if wi < 0 or wi >= IMG_W:
                    continue
                for ic in range(IMG_C):
                    for ki in range(3):
                        w1m[ki * ROW1 + wi * IMG_C + ic, col] = w[oc, ic, ki, kj]
                    for ki in (1, 2):
                        w1t[(ki - 1) * ROW1 + wi * IMG_C + ic, col] = w[oc, ic, ki, kj]
    bias = np.tile(np.asarray(bc1, np.float32), W1).reshape(1, W1 * C1)
    return w1m, w1t, bias


def _conv2_band_weight(wc2, bc2):
    """Fold Conv2d(8->16, k3, s2, p1) on the zero-row-padded NHWC conv1 slab into
    a single shared band matrix (192, 64); the pad row in the slab supplies the
    ki=0 zeros for output row 0."""
    w = np.asarray(wc2, np.float32)             # (C2, C1, 3, 3) OIHW
    band = np.zeros((3 * ROW2, W2 * C2), np.float32)
    for ow in range(W2):
        for oc in range(C2):
            col = ow * C2 + oc
            for kj in range(3):
                wi = 2 * ow - 1 + kj
                if wi < 0 or wi >= W1:
                    continue
                for ic in range(C1):
                    for ki in range(3):
                        band[ki * ROW2 + wi * C1 + ic, col] = w[oc, ic, ki, kj]
    bias = np.tile(np.asarray(bc2, np.float32), W2).reshape(1, W2 * C2)
    return band, bias


def init_params(key):
    """Returns (raw torch-layout params, packed kernel params)."""
    ks = jax.random.split(key, 10)

    def uni(k, shape, fan_in):
        s = float(1.0 / np.sqrt(fan_in))
        return jax.random.uniform(k, shape, jnp.float32, -s, s)

    feat = 32 + FC1_IN_IMG                      # 288
    raw = dict(
        ws=uni(ks[0], (STATE_DIM, 32), STATE_DIM),
        bs=uni(ks[1], (1, 32), STATE_DIM),
        wc1=uni(ks[2], (C1, IMG_C, 3, 3), IMG_C * 9),
        bc1=uni(ks[3], (C1,), IMG_C * 9),
        wc2=uni(ks[4], (C2, C1, 3, 3), C1 * 9),
        bc2=uni(ks[5], (C2,), C1 * 9),
        wf1=uni(ks[6], (feat, FC1_OUT), feat),
        bf1=uni(ks[7], (1, FC1_OUT), feat),
        wf2=uni(ks[8], (FC1_OUT, 1), FC1_OUT),
        bf2=uni(ks[9], (1, 1), FC1_OUT),
    )

    bf16 = jnp.bfloat16
    w1m, w1t, b1 = _conv1_band_weights(raw["wc1"], raw["bc1"])
    w2b, b2 = _conv2_band_weight(raw["wc2"], raw["bc2"])

    # fc1: split state/image parts, permute image rows from torch NCHW-flatten
    # (oc, oh, ow) to the kernel's NHWC band layout (oh, ow, oc), pad N to 128.
    wf1 = np.asarray(raw["wf1"], np.float32)
    perm = np.empty(FC1_IN_IMG, np.int32)
    for oh in range(H2):
        for ow in range(W2):
            for oc in range(C2):
                perm[oh * (W2 * C2) + ow * C2 + oc] = oc * (H2 * W2) + oh * W2 + ow
    wf1s = np.zeros((32, 128), np.float32); wf1s[:, :FC1_OUT] = wf1[:32]
    wf1i = np.zeros((FC1_IN_IMG, 128), np.float32); wf1i[:, :FC1_OUT] = wf1[32:][perm]
    bf1 = np.zeros((1, 128), np.float32); bf1[:, :FC1_OUT] = np.asarray(raw["bf1"], np.float32)
    # fc2: pad to (128, 128) so the final store is a full 128-lane vst
    wf2 = np.zeros((128, 128), np.float32)
    wf2[:FC1_OUT, 0] = np.asarray(raw["wf2"], np.float32)[:, 0]
    bf2 = np.zeros((1, 128), np.float32)
    bf2[0, 0] = float(np.asarray(raw["bf2"])[0, 0])

    packed = dict(
        ws=jnp.asarray(raw["ws"], jnp.float32),          # tiny; keep f32
        bs=jnp.asarray(raw["bs"], jnp.float32),
        w1t=jnp.asarray(w1t, bf16), w1m=jnp.asarray(w1m, bf16),
        b1=jnp.asarray(b1, jnp.float32),
        w2=jnp.asarray(w2b, bf16), b2=jnp.asarray(b2, jnp.float32),
        wf1s=jnp.asarray(wf1s, bf16), wf1i=jnp.asarray(wf1i, bf16),
        bf1=jnp.asarray(bf1, jnp.float32),
        wf2=jnp.asarray(wf2, bf16), bf2=jnp.asarray(bf2, jnp.float32),
    )
    return raw, packed


# --------------------------------- forward --------------------------------- #
def _round_up(x, m):
    return (x + m - 1) // m * m


@jax.jit
def critic_forward(params, state, image_nhwc):
    """Mirrors Critic.forward (the NHWC->NCHW permute, flatten and concat are all
    folded into the weight packing at init).  Returns (B, 1) f32 critic values."""
    if state.ndim == 1:
        state = state[None, :]
    if image_nhwc.ndim == 3:
        image_nhwc = image_nhwc[None, ...]
    B = state.shape[0]
    state = state.astype(jnp.float32)
    img = image_nhwc.astype(jnp.float32).reshape(B, IMG_H * IMG_W * IMG_C)

    # batch tiling: weights stay VMEM-resident, activations stream per tile
    bt = min(256, _round_up(max(B, 1), 16))
    bp = _round_up(B, bt)
    if bp != B:
        state = jnp.pad(state, ((0, bp - B), (0, 0)))
        img = jnp.pad(img, ((0, bp - B), (0, 0)))

    weights = (params["ws"], params["bs"],
               params["w1t"], params["w1m"], params["b1"],
               params["w2"], params["b2"],
               params["wf1s"], params["wf1i"], params["bf1"],
               params["wf2"], params["bf2"])

    in_specs = (
        [pl.BlockSpec((bt, STATE_DIM), lambda i: (i, 0)),
         pl.BlockSpec((bt, IMG_H * IMG_W * IMG_C), lambda i: (i, 0))]
        + [pl.BlockSpec(w.shape, lambda i: (0, 0)) for w in weights])

    flops_per_row = 2 * (STATE_DIM * 32
                         + 2 * ROW1 * (W1 * C1) + (H1 - 1) * 3 * ROW1 * (W1 * C1)
                         + H2 * 3 * ROW2 * (W2 * C2)
                         + 32 * 128 + FC1_IN_IMG * 128 + 128 * 128)
    weight_bytes = sum(int(np.prod(w.shape)) * w.dtype.itemsize for w in weights)
    bytes_accessed = weight_bytes + bp * (STATE_DIM + IMG_H * IMG_W * IMG_C + 128) * 4

    out = pl.pallas_call(
        _critic_kernel,
        out_shape=jax.ShapeDtypeStruct((bp, 128), jnp.float32),
        grid=(bp // bt,),
        in_specs=in_specs,
        out_specs=pl.BlockSpec((bt, 128), lambda i: (i, 0)),
        scratch_shapes=[pltpu.VMEM((bt, (H1 + 1) * ROW2), jnp.bfloat16)],
        compiler_params=pltpu.CompilerParams(
            dimension_semantics=("parallel",),
            vmem_limit_bytes=8 * 1024 * 1024),
        cost_estimate=pl.CostEstimate(flops=int(flops_per_row * bp),
                                      transcendentals=0,
                                      bytes_accessed=int(bytes_accessed)),
    )(state, img, *weights)
    return out[:B, :1]


# ------------------------------ f32 reference ------------------------------ #
@jax.jit
def _reference_forward(raw, state, image_nhwc):
    s = state.astype(jnp.float32)
    x = image_nhwc.astype(jnp.float32)
    if s.ndim == 1:
        s = s[None, :]
    if x.ndim == 3:
        x = x[None, ...]
    x = jnp.transpose(x, (0, 3, 1, 2))                               # NHWC -> NCHW
    sf = jax.nn.relu(s @ raw["ws"] + raw["bs"])
    a = jax.lax.conv_general_dilated(x, raw["wc1"], (2, 2), ((1, 1), (1, 1)),
                                     dimension_numbers=("NCHW", "OIHW", "NCHW"))
    a = jax.nn.relu(a + raw["bc1"][None, :, None, None])
    a = jax.lax.conv_general_dilated(a, raw["wc2"], (2, 2), ((1, 1), (1, 1)),
                                     dimension_numbers=("NCHW", "OIHW", "NCHW"))
    a = jax.nn.relu(a + raw["bc2"][None, :, None, None])
    feat = jnp.concatenate([sf, a.reshape(a.shape[0], -1)], axis=1)  # torch.cat
    h = jax.nn.relu(feat @ raw["wf1"] + raw["bf1"])
    return h @ raw["wf2"] + raw["bf2"]


if __name__ == "__main__":
    key = jax.random.PRNGKey(0)
    kp, k_state, k_img = jax.random.split(key, 3)
    raw, packed = init_params(kp)

    state = jax.random.normal(k_state, (2, STATE_DIM), jnp.float32)
    image = jax.random.normal(k_img, (2, IMG_H, IMG_W, IMG_C), jnp.float32)  # NHWC

    value = jax.block_until_ready(critic_forward(packed, state, image))
    assert value.shape == (2, 1), value.shape

    ref = jax.block_until_ready(_reference_forward(raw, state, image))
    np.testing.assert_allclose(np.asarray(value), np.asarray(ref),
                               rtol=5e-2, atol=5e-2)
    print("KERNEL_OK")
</pallas_src>

<mosaic_0001>
module attributes {stable_mosaic.version = 11 : i64} {
  func.func @_critic_kernel(%arg0: i32, %arg1: memref<16x8xf32, #tpu.memory_space<vmem>>, %arg2: memref<16x1024xf32, #tpu.memory_space<vmem>>, %arg3: memref<8x32xf32, #tpu.memory_space<vmem>>, %arg4: memref<1x32xf32, #tpu.memory_space<vmem>>, %arg5: memref<128x64xbf16, #tpu.memory_space<vmem>>, %arg6: memref<192x64xbf16, #tpu.memory_space<vmem>>, %arg7: memref<1x64xf32, #tpu.memory_space<vmem>>, %arg8: memref<192x64xbf16, #tpu.memory_space<vmem>>, %arg9: memref<1x64xf32, #tpu.memory_space<vmem>>, %arg10: memref<32x128xbf16, #tpu.memory_space<vmem>>, %arg11: memref<256x128xbf16, #tpu.memory_space<vmem>>, %arg12: memref<1x128xf32, #tpu.memory_space<vmem>>, %arg13: memref<128x128xbf16, #tpu.memory_space<vmem>>, %arg14: memref<1x128xf32, #tpu.memory_space<vmem>>, %arg15: memref<16x128xf32, #tpu.memory_space<vmem>>, %arg16: memref<16x576xbf16, #tpu.memory_space<vmem>>) attributes {dimension_semantics = [#tpu.dimension_semantics<parallel>], iteration_bounds = array<i64: 1>, scalar_prefetch = 0 : i64, scratch_operands = 1 : i64, tpu.core_type = #tpu.core_type<tc>, window_params = [{transform_indices = @transform_0, window_bounds = array<i64: 16, 8>}, {transform_indices = @transform_1, window_bounds = array<i64: 16, 1024>}, {pipeline_mode = #tpu.pipeline_mode<synchronous>, transform_indices = @transform_2, window_bounds = array<i64: 8, 32>}, {pipeline_mode = #tpu.pipeline_mode<synchronous>, transform_indices = @transform_3, window_bounds = array<i64: 1, 32>}, {pipeline_mode = #tpu.pipeline_mode<synchronous>, transform_indices = @transform_4, window_bounds = array<i64: 128, 64>}, {pipeline_mode = #tpu.pipeline_mode<synchronous>, transform_indices = @transform_5, window_bounds = array<i64: 192, 64>}, {pipeline_mode = #tpu.pipeline_mode<synchronous>, transform_indices = @transform_6, window_bounds = array<i64: 1, 64>}, {pipeline_mode = #tpu.pipeline_mode<synchronous>, transform_indices = @transform_7, window_bounds = array<i64: 192, 64>}, {pipeline_mode = #tpu.pipeline_mode<synchronous>, transform_indices = @transform_8, window_bounds = array<i64: 1, 64>}, {pipeline_mode = #tpu.pipeline_mode<synchronous>, transform_indices = @transform_9, window_bounds = array<i64: 32, 128>}, {pipeline_mode = #tpu.pipeline_mode<synchronous>, transform_indices = @transform_10, window_bounds = array<i64: 256, 128>}, {pipeline_mode = #tpu.pipeline_mode<synchronous>, transform_indices = @transform_11, window_bounds = array<i64: 1, 128>}, {pipeline_mode = #tpu.pipeline_mode<synchronous>, transform_indices = @transform_12, window_bounds = array<i64: 128, 128>}, {pipeline_mode = #tpu.pipeline_mode<synchronous>, transform_indices = @transform_13, window_bounds = array<i64: 1, 128>}, {transform_indices = @transform_14, window_bounds = array<i64: 16, 128>}]} {
    %c0 = arith.constant 0 : index
    %c0_0 = arith.constant 0 : index
    %0 = vector.load %arg1[%c0, %c0_0] : memref<16x8xf32, #tpu.memory_space<vmem>>, vector<16x8xf32>
    %c0_1 = arith.constant 0 : index
    %c0_2 = arith.constant 0 : index
    %1 = vector.load %arg3[%c0_1, %c0_2] : memref<8x32xf32, #tpu.memory_space<vmem>>, vector<8x32xf32>
    %cst = arith.constant dense<0.000000e+00> : vector<16x32xf32>
    %2 = tpu.matmul %0, %1, %cst {dimension_numbers = #tpu.dot_dimension_numbers<[1], [0], [0], [1], [0, 0, 1, 1], [], []>} : vector<16x8xf32>, vector<8x32xf32>, vector<16x32xf32> -> vector<16x32xf32>
    %c0_3 = arith.constant 0 : index
    %c0_4 = arith.constant 0 : index
    %3 = vector.load %arg4[%c0_3, %c0_4] : memref<1x32xf32, #tpu.memory_space<vmem>>, vector<1x32xf32>
    %4 = vector.broadcast %3 : vector<1x32xf32> to vector<16x32xf32>
    %5 = arith.addf %2, %4 : vector<16x32xf32>
    %cst_5 = arith.constant 0.000000e+00 : f32
    %6 = vector.broadcast %cst_5 : f32 to vector<16x32xf32>
    %7 = arith.maximumf %5, %6 : vector<16x32xf32>
    %c0_6 = arith.constant 0 : index
    %c0_7 = arith.constant 0 : index
    %8 = vector.load %arg7[%c0_6, %c0_7] : memref<1x64xf32, #tpu.memory_space<vmem>>, vector<1x64xf32>
    %cst_8 = arith.constant 0.000000e+00 : bf16
    %9 = vector.broadcast %cst_8 : bf16 to vector<16x64xbf16>
    %c0_9 = arith.constant 0 : index
    %c0_10 = arith.constant 0 : index
    %10 = vector.load %arg16[%c0_9, %c0_10] : memref<16x576xbf16, #tpu.memory_space<vmem>>, vector<16x64xbf16>
    tpu.vector_store %arg16[%c0_9, %c0_10], %9 {strides = array<i32>} : memref<16x576xbf16, #tpu.memory_space<vmem>>, vector<16x64xbf16>,
    %c0_11 = arith.constant 0 : index
    %c0_12 = arith.constant 0 : index
    %11 = vector.load %arg2[%c0_11, %c0_12] : memref<16x1024xf32, #tpu.memory_space<vmem>>, vector<16x128xf32>
    %12 = arith.truncf %11 : vector<16x128xf32> to vector<16x128xbf16>
    %c0_13 = arith.constant 0 : index
    %c0_14 = arith.constant 0 : index
    %13 = vector.load %arg5[%c0_13, %c0_14] : memref<128x64xbf16, #tpu.memory_space<vmem>>, vector<128x64xbf16>
    %cst_15 = arith.constant dense<0.000000e+00> : vector<16x64xf32>
    %14 = tpu.matmul %12, %13, %cst_15 {dimension_numbers = #tpu.dot_dimension_numbers<[1], [0], [0], [1], [0, 0, 1, 1], [], []>} : vector<16x128xbf16>, vector<128x64xbf16>, vector<16x64xf32> -> vector<16x64xf32>
    %15 = vector.broadcast %8 : vector<1x64xf32> to vector<16x64xf32>
    %16 = arith.addf %14, %15 : vector<16x64xf32>
    %cst_16 = arith.constant 0.000000e+00 : f32
    %17 = vector.broadcast %cst_16 : f32 to vector<16x64xf32>
    %18 = arith.maximumf %16, %17 : vector<16x64xf32>
    %19 = arith.truncf %18 : vector<16x64xf32> to vector<16x64xbf16>
    %c0_17 = arith.constant 0 : index
    %c64 = arith.constant 64 : index
    %20 = vector.load %arg16[%c0_17, %c64] : memref<16x576xbf16, #tpu.memory_space<vmem>>, vector<16x64xbf16>
    tpu.vector_store %arg16[%c0_17, %c64], %19 {strides = array<i32>} : memref<16x576xbf16, #tpu.memory_space<vmem>>, vector<16x64xbf16>,
    %c0_18 = arith.constant 0 : index
    %c64_19 = arith.constant 64 : index
    %21 = vector.load %arg2[%c0_18, %c64_19] : memref<16x1024xf32, #tpu.memory_space<vmem>>, vector<16x192xf32>
    %22 = arith.truncf %21 : vector<16x192xf32> to vector<16x192xbf16>
    %c0_20 = arith.constant 0 : index
    %c0_21 = arith.constant 0 : index
    %23 = vector.load %arg6[%c0_20, %c0_21] : memref<192x64xbf16, #tpu.memory_space<vmem>>, vector<192x64xbf16>
    %cst_22 = arith.constant dense<0.000000e+00> : vector<16x64xf32>
    %24 = tpu.matmul %22, %23, %cst_22 {dimension_numbers = #tpu.dot_dimension_numbers<[1], [0], [0], [1], [0, 0, 1, 1], [], []>} : vector<16x192xbf16>, vector<192x64xbf16>, vector<16x64xf32> -> vector<16x64xf32>
    %25 = vector.broadcast %8 : vector<1x64xf32> to vector<16x64xf32>
    %26 = arith.addf %24, %25 : vector<16x64xf32>
    %cst_23 = arith.constant 0.000000e+00 : f32
    %27 = vector.broadcast %cst_23 : f32 to vector<16x64xf32>
    %28 = arith.maximumf %26, %27 : vector<16x64xf32>
    %29 = arith.truncf %28 : vector<16x64xf32> to vector<16x64xbf16>
    %c0_24 = arith.constant 0 : index
    %c128 = arith.constant 128 : index
    %30 = vector.load %arg16[%c0_24, %c128] : memref<16x576xbf16, #tpu.memory_space<vmem>>, vector<16x64xbf16>
    tpu.vector_store %arg16[%c0_24, %c128], %29 {strides = array<i32>} : memref<16x576xbf16, #tpu.memory_space<vmem>>, vector<16x64xbf16>,
    %c0_25 = arith.constant 0 : index
    %c192 = arith.constant 192 : index
    %31 = vector.load %arg2[%c0_25, %c192] : memref<16x1024xf32, #tpu.memory_space<vmem>>, vector<16x192xf32>
    %32 = arith.truncf %31 : vector<16x192xf32> to vector<16x192xbf16>
    %c0_26 = arith.constant 0 : index
    %c0_27 = arith.constant 0 : index
    %33 = vector.load %arg6[%c0_26, %c0_27] : memref<192x64xbf16, #tpu.memory_space<vmem>>, vector<192x64xbf16>
    %cst_28 = arith.constant dense<0.000000e+00> : vector<16x64xf32>
    %34 = tpu.matmul %32, %33, %cst_28 {dimension_numbers = #tpu.dot_dimension_numbers<[1], [0], [0], [1], [0, 0, 1, 1], [], []>} : vector<16x192xbf16>, vector<192x64xbf16>, vector<16x64xf32> -> vector<16x64xf32>
    %35 = vector.broadcast %8 : vector<1x64xf32> to vector<16x64xf32>
    %36 = arith.addf %34, %35 : vector<16x64xf32>
    %cst_29 = arith.constant 0.000000e+00 : f32
    %37 = vector.broadcast %cst_29 : f32 to vector<16x64xf32>
    %38 = arith.maximumf %36, %37 : vector<16x64xf32>
    %39 = arith.truncf %38 : vector<16x64xf32> to vector<16x64xbf16>
    %c0_30 = arith.constant 0 : index
    %c192_31 = arith.constant 192 : index
    %40 = vector.load %arg16[%c0_30, %c192_31] : memref<16x576xbf16, #tpu.memory_space<vmem>>, vector<16x64xbf16>
    tpu.vector_store %arg16[%c0_30, %c192_31], %39 {strides = array<i32>} : memref<16x576xbf16, #tpu.memory_space<vmem>>, vector<16x64xbf16>,
    %c0_32 = arith.constant 0 : index
    %c320 = arith.constant 320 : index
    %41 = vector.load %arg2[%c0_32, %c320] : memref<16x1024xf32, #tpu.memory_space<vmem>>, vector<16x192xf32>
    %42 = arith.truncf %41 : vector<16x192xf32> to vector<16x192xbf16>
    %c0_33 = arith.constant 0 : index
    %c0_34 = arith.constant 0 : index
    %43 = vector.load %arg6[%c0_33, %c0_34] : memref<192x64xbf16, #tpu.memory_space<vmem>>, vector<192x64xbf16>
    %cst_35 = arith.constant dense<0.000000e+00> : vector<16x64xf32>
    %44 = tpu.matmul %42, %43, %cst_35 {dimension_numbers = #tpu.dot_dimension_numbers<[1], [0], [0], [1], [0, 0, 1, 1], [], []>} : vector<16x192xbf16>, vector<192x64xbf16>, vector<16x64xf32> -> vector<16x64xf32>
    %45 = vector.broadcast %8 : vector<1x64xf32> to vector<16x64xf32>
    %46 = arith.addf %44, %45 : vector<16x64xf32>
    %cst_36 = arith.constant 0.000000e+00 : f32
    %47 = vector.broadcast %cst_36 : f32 to vector<16x64xf32>
    %48 = arith.maximumf %46, %47 : vector<16x64xf32>
    %49 = arith.truncf %48 : vector<16x64xf32> to vector<16x64xbf16>
    %c0_37 = arith.constant 0 : index
    %c256 = arith.constant 256 : index
    %50 = vector.load %arg16[%c0_37, %c256] : memref<16x576xbf16, #tpu.memory_space<vmem>>, vector<16x64xbf16>
    tpu.vector_store %arg16[%c0_37, %c256], %49 {strides = array<i32>} : memref<16x576xbf16, #tpu.memory_space<vmem>>, vector<16x64xbf16>,
    %c0_38 = arith.constant 0 : index
    %c448 = arith.constant 448 : index
    %51 = vector.load %arg2[%c0_38, %c448] : memref<16x1024xf32, #tpu.memory_space<vmem>>, vector<16x192xf32>
    %52 = arith.truncf %51 : vector<16x192xf32> to vector<16x192xbf16>
    %c0_39 = arith.constant 0 : index
    %c0_40 = arith.constant 0 : index
    %53 = vector.load %arg6[%c0_39, %c0_40] : memref<192x64xbf16, #tpu.memory_space<vmem>>, vector<192x64xbf16>
    %cst_41 = arith.constant dense<0.000000e+00> : vector<16x64xf32>
    %54 = tpu.matmul %52, %53, %cst_41 {dimension_numbers = #tpu.dot_dimension_numbers<[1], [0], [0], [1], [0, 0, 1, 1], [], []>} : vector<16x192xbf16>, vector<192x64xbf16>, vector<16x64xf32> -> vector<16x64xf32>
    %55 = vector.broadcast %8 : vector<1x64xf32> to vector<16x64xf32>
    %56 = arith.addf %54, %55 : vector<16x64xf32>
    %cst_42 = arith.constant 0.000000e+00 : f32
    %57 = vector.broadcast %cst_42 : f32 to vector<16x64xf32>
    %58 = arith.maximumf %56, %57 : vector<16x64xf32>
    %59 = arith.truncf %58 : vector<16x64xf32> to vector<16x64xbf16>
    %c0_43 = arith.constant 0 : index
    %c320_44 = arith.constant 320 : index
    %60 = vector.load %arg16[%c0_43, %c320_44] : memref<16x576xbf16, #tpu.memory_space<vmem>>, vector<16x64xbf16>
    tpu.vector_store %arg16[%c0_43, %c320_44], %59 {strides = array<i32>} : memref<16x576xbf16, #tpu.memory_space<vmem>>, vector<16x64xbf16>,
    %c0_45 = arith.constant 0 : index
    %c576 = arith.constant 576 : index
    %61 = vector.load %arg2[%c0_45, %c576] : memref<16x1024xf32, #tpu.memory_space<vmem>>, vector<16x192xf32>
    %62 = arith.truncf %61 : vector<16x192xf32> to vector<16x192xbf16>
    %c0_46 = arith.constant 0 : index
    %c0_47 = arith.constant 0 : index
    %63 = vector.load %arg6[%c0_46, %c0_47] : memref<192x64xbf16, #tpu.memory_space<vmem>>, vector<192x64xbf16>
    %cst_48 = arith.constant dense<0.000000e+00> : vector<16x64xf32>
    %64 = tpu.matmul %62, %63, %cst_48 {dimension_numbers = #tpu.dot_dimension_numbers<[1], [0], [0], [1], [0, 0, 1, 1], [], []>} : vector<16x192xbf16>, vector<192x64xbf16>, vector<16x64xf32> -> vector<16x64xf32>
    %65 = vector.broadcast %8 : vector<1x64xf32> to vector<16x64xf32>
    %66 = arith.addf %64, %65 : vector<16x64xf32>
    %cst_49 = arith.constant 0.000000e+00 : f32
    %67 = vector.broadcast %cst_49 : f32 to vector<16x64xf32>
    %68 = arith.maximumf %66, %67 : vector<16x64xf32>
    %69 = arith.truncf %68 : vector<16x64xf32> to vector<16x64xbf16>
    %c0_50 = arith.constant 0 : index
    %c384 = arith.constant 384 : index
    %70 = vector.load %arg16[%c0_50, %c384] : memref<16x576xbf16, #tpu.memory_space<vmem>>, vector<16x64xbf16>
    tpu.vector_store %arg16[%c0_50, %c384], %69 {strides = array<i32>} : memref<16x576xbf16, #tpu.memory_space<vmem>>, vector<16x64xbf16>,
    %c0_51 = arith.constant 0 : index
    %c704 = arith.constant 704 : index
    %71 = vector.load %arg2[%c0_51, %c704] : memref<16x1024xf32, #tpu.memory_space<vmem>>, vector<16x192xf32>
    %72 = arith.truncf %71 : vector<16x192xf32> to vector<16x192xbf16>
    %c0_52 = arith.constant 0 : index
    %c0_53 = arith.constant 0 : index
    %73 = vector.load %arg6[%c0_52, %c0_53] : memref<192x64xbf16, #tpu.memory_space<vmem>>, vector<192x64xbf16>
    %cst_54 = arith.constant dense<0.000000e+00> : vector<16x64xf32>
    %74 = tpu.matmul %72, %73, %cst_54 {dimension_numbers = #tpu.dot_dimension_numbers<[1], [0], [0], [1], [0, 0, 1, 1], [], []>} : vector<16x192xbf16>, vector<192x64xbf16>, vector<16x64xf32> -> vector<16x64xf32>
    %75 = vector.broadcast %8 : vector<1x64xf32> to vector<16x64xf32>
    %76 = arith.addf %74, %75 : vector<16x64xf32>
    %cst_55 = arith.constant 0.000000e+00 : f32
    %77 = vector.broadcast %cst_55 : f32 to vector<16x64xf32>
    %78 = arith.maximumf %76, %77 : vector<16x64xf32>
    %79 = arith.truncf %78 : vector<16x64xf32> to vector<16x64xbf16>
    %c0_56 = arith.constant 0 : index
    %c448_57 = arith.constant 448 : index
    %80 = vector.load %arg16[%c0_56, %c448_57] : memref<16x576xbf16, #tpu.memory_space<vmem>>, vector<16x64xbf16>
    tpu.vector_store %arg16[%c0_56, %c448_57], %79 {strides = array<i32>} : memref<16x576xbf16, #tpu.memory_space<vmem>>, vector<16x64xbf16>,
    %c0_58 = arith.constant 0 : index
    %c832 = arith.constant 832 : index
    %81 = vector.load %arg2[%c0_58, %c832] : memref<16x1024xf32, #tpu.memory_space<vmem>>, vector<16x192xf32>
    %82 = arith.truncf %81 : vector<16x192xf32> to vector<16x192xbf16>
    %c0_59 = arith.constant 0 : index
    %c0_60 = arith.constant 0 : index
    %83 = vector.load %arg6[%c0_59, %c0_60] : memref<192x64xbf16, #tpu.memory_space<vmem>>, vector<192x64xbf16>
    %cst_61 = arith.constant dense<0.000000e+00> : vector<16x64xf32>
    %84 = tpu.matmul %82, %83, %cst_61 {dimension_numbers = #tpu.dot_dimension_numbers<[1], [0], [0], [1], [0, 0, 1, 1], [], []>} : vector<16x192xbf16>, vector<192x64xbf16>, vector<16x64xf32> -> vector<16x64xf32>
    %85 = vector.broadcast %8 : vector<1x64xf32> to vector<16x64xf32>
    %86 = arith.addf %84, %85 : vector<16x64xf32>
    %cst_62 = arith.constant 0.000000e+00 : f32
    %87 = vector.broadcast %cst_62 : f32 to vector<16x64xf32>
    %88 = arith.maximumf %86, %87 : vector<16x64xf32>
    %89 = arith.truncf %88 : vector<16x64xf32> to vector<16x64xbf16>
    %c0_63 = arith.constant 0 : index
    %c512 = arith.constant 512 : index
    %90 = vector.load %arg16[%c0_63, %c512] : memref<16x576xbf16, #tpu.memory_space<vmem>>, vector<16x64xbf16>
    tpu.vector_store %arg16[%c0_63, %c512], %89 {strides = array<i32>} : memref<16x576xbf16, #tpu.memory_space<vmem>>, vector<16x64xbf16>,
    %c0_64 = arith.constant 0 : index
    %c0_65 = arith.constant 0 : index
    %91 = vector.load %arg9[%c0_64, %c0_65] : memref<1x64xf32, #tpu.memory_space<vmem>>, vector<1x64xf32>
    %92 = arith.truncf %7 : vector<16x32xf32> to vector<16x32xbf16>
    %c0_66 = arith.constant 0 : index
    %c0_67 = arith.constant 0 : index
    %93 = vector.load %arg10[%c0_66, %c0_67] : memref<32x128xbf16, #tpu.memory_space<vmem>>, vector<32x128xbf16>
    %cst_68 = arith.constant dense<0.000000e+00> : vector<16x128xf32>
    %94 = tpu.matmul %92, %93, %cst_68 {dimension_numbers = #tpu.dot_dimension_numbers<[1], [0], [0], [1], [0, 0, 1, 1], [], []>} : vector<16x32xbf16>, vector<32x128xbf16>, vector<16x128xf32> -> vector<16x128xf32>
    %c0_69 = arith.constant 0 : index
    %c0_70 = arith.constant 0 : index
    %95 = vector.load %arg12[%c0_69, %c0_70] : memref<1x128xf32, #tpu.memory_space<vmem>>, vector<1x128xf32>
    %96 = vector.broadcast %95 : vector<1x128xf32> to vector<16x128xf32>
    %97 = arith.addf %94, %96 : vector<16x128xf32>
    %c0_71 = arith.constant 0 : index
    %c0_72 = arith.constant 0 : index
    %98 = vector.load %arg16[%c0_71, %c0_72] : memref<16x576xbf16, #tpu.memory_space<vmem>>, vector<16x192xbf16>
    %c0_73 = arith.constant 0 : index
    %c0_74 = arith.constant 0 : index
    %99 = vector.load %arg8[%c0_73, %c0_74] : memref<192x64xbf16, #tpu.memory_space<vmem>>, vector<192x64xbf16>
    %cst_75 = arith.constant dense<0.000000e+00> : vector<16x64xf32>
    %100 = tpu.matmul %98, %99, %cst_75 {dimension_numbers = #tpu.dot_dimension_numbers<[1], [0], [0], [1], [0, 0, 1, 1], [], []>} : vector<16x192xbf16>, vector<192x64xbf16>, vector<16x64xf32> -> vector<16x64xf32>
    %101 = vector.broadcast %91 : vector<1x64xf32> to vector<16x64xf32>
    %102 = arith.addf %100, %101 : vector<16x64xf32>
    %cst_76 = arith.constant 0.000000e+00 : f32
    %103 = vector.broadcast %cst_76 : f32 to vector<16x64xf32>
    %104 = arith.maximumf %102, %103 : vector<16x64xf32>
    %105 = arith.truncf %104 : vector<16x64xf32> to vector<16x64xbf16>
    %c0_77 = arith.constant 0 : index
    %c0_78 = arith.constant 0 : index
    %106 = vector.load %arg11[%c0_77, %c0_78] : memref<256x128xbf16, #tpu.memory_space<vmem>>, vector<64x128xbf16>
    %cst_79 = arith.constant dense<0.000000e+00> : vector<16x128xf32>
    %107 = tpu.matmul %105, %106, %cst_79 {dimension_numbers = #tpu.dot_dimension_numbers<[1], [0], [0], [1], [0, 0, 1, 1], [], []>} : vector<16x64xbf16>, vector<64x128xbf16>, vector<16x128xf32> -> vector<16x128xf32>
    %108 = arith.addf %97, %107 : vector<16x128xf32>
    %c0_80 = arith.constant 0 : index
    %c128_81 = arith.constant 128 : index
    %109 = vector.load %arg16[%c0_80, %c128_81] : memref<16x576xbf16, #tpu.memory_space<vmem>>, vector<16x192xbf16>
    %c0_82 = arith.constant 0 : index
    %c0_83 = arith.constant 0 : index
    %110 = vector.load %arg8[%c0_82, %c0_83] : memref<192x64xbf16, #tpu.memory_space<vmem>>, vector<192x64xbf16>
    %cst_84 = arith.constant dense<0.000000e+00> : vector<16x64xf32>
    %111 = tpu.matmul %109, %110, %cst_84 {dimension_numbers = #tpu.dot_dimension_numbers<[1], [0], [0], [1], [0, 0, 1, 1], [], []>} : vector<16x192xbf16>, vector<192x64xbf16>, vector<16x64xf32> -> vector<16x64xf32>
    %112 = vector.broadcast %91 : vector<1x64xf32> to vector<16x64xf32>
    %113 = arith.addf %111, %112 : vector<16x64xf32>
    %cst_85 = arith.constant 0.000000e+00 : f32
    %114 = vector.broadcast %cst_85 : f32 to vector<16x64xf32>
    %115 = arith.maximumf %113, %114 : vector<16x64xf32>
    %116 = arith.truncf %115 : vector<16x64xf32> to vector<16x64xbf16>
    %c64_86 = arith.constant 64 : index
    %c0_87 = arith.constant 0 : index
    %117 = vector.load %arg11[%c64_86, %c0_87] : memref<256x128xbf16, #tpu.memory_space<vmem>>, vector<64x128xbf16>
    %cst_88 = arith.constant dense<0.000000e+00> : vector<16x128xf32>
    %118 = tpu.matmul %116, %117, %cst_88 {dimension_numbers = #tpu.dot_dimension_numbers<[1], [0], [0], [1], [0, 0, 1, 1], [], []>} : vector<16x64xbf16>, vector<64x128xbf16>, vector<16x128xf32> -> vector<16x128xf32>
    %119 = arith.addf %108, %118 : vector<16x128xf32>
    %c0_89 = arith.constant 0 : index
    %c256_90 = arith.constant 256 : index
    %120 = vector.load %arg16[%c0_89, %c256_90] : memref<16x576xbf16, #tpu.memory_space<vmem>>, vector<16x192xbf16>
    %c0_91 = arith.constant 0 : index
    %c0_92 = arith.constant 0 : index
    %121 = vector.load %arg8[%c0_91, %c0_92] : memref<192x64xbf16, #tpu.memory_space<vmem>>, vector<192x64xbf16>
    %cst_93 = arith.constant dense<0.000000e+00> : vector<16x64xf32>
    %122 = tpu.matmul %120, %121, %cst_93 {dimension_numbers = #tpu.dot_dimension_numbers<[1], [0], [0], [1], [0, 0, 1, 1], [], []>} : vector<16x192xbf16>, vector<192x64xbf16>, vector<16x64xf32> -> vector<16x64xf32>
    %123 = vector.broadcast %91 : vector<1x64xf32> to vector<16x64xf32>
    %124 = arith.addf %122, %123 : vector<16x64xf32>
    %cst_94 = arith.constant 0.000000e+00 : f32
    %125 = vector.broadcast %cst_94 : f32 to vector<16x64xf32>
    %126 = arith.maximumf %124, %125 : vector<16x64xf32>
    %127 = arith.truncf %126 : vector<16x64xf32> to vector<16x64xbf16>
    %c128_95 = arith.constant 128 : index
    %c0_96 = arith.constant 0 : index
    %128 = vector.load %arg11[%c128_95, %c0_96] : memref<256x128xbf16, #tpu.memory_space<vmem>>, vector<64x128xbf16>
    %cst_97 = arith.constant dense<0.000000e+00> : vector<16x128xf32>
    %129 = tpu.matmul %127, %128, %cst_97 {dimension_numbers = #tpu.dot_dimension_numbers<[1], [0], [0], [1], [0, 0, 1, 1], [], []>} : vector<16x64xbf16>, vector<64x128xbf16>, vector<16x128xf32> -> vector<16x128xf32>
    %130 = arith.addf %119, %129 : vector<16x128xf32>
    %c0_98 = arith.constant 0 : index
    %c384_99 = arith.constant 384 : index
    %131 = vector.load %arg16[%c0_98, %c384_99] : memref<16x576xbf16, #tpu.memory_space<vmem>>, vector<16x192xbf16>
    %c0_100 = arith.constant 0 : index
    %c0_101 = arith.constant 0 : index
    %132 = vector.load %arg8[%c0_100, %c0_101] : memref<192x64xbf16, #tpu.memory_space<vmem>>, vector<192x64xbf16>
    %cst_102 = arith.constant dense<0.000000e+00> : vector<16x64xf32>
    %133 = tpu.matmul %131, %132, %cst_102 {dimension_numbers = #tpu.dot_dimension_numbers<[1], [0], [0], [1], [0, 0, 1, 1], [], []>} : vector<16x192xbf16>, vector<192x64xbf16>, vector<16x64xf32> -> vector<16x64xf32>
    %134 = vector.broadcast %91 : vector<1x64xf32> to vector<16x64xf32>
    %135 = arith.addf %133, %134 : vector<16x64xf32>
    %cst_103 = arith.constant 0.000000e+00 : f32
    %136 = vector.broadcast %cst_103 : f32 to vector<16x64xf32>
    %137 = arith.maximumf %135, %136 : vector<16x64xf32>
    %138 = arith.truncf %137 : vector<16x64xf32> to vector<16x64xbf16>
    %c192_104 = arith.constant 192 : index
    %c0_105 = arith.constant 0 : index
    %139 = vector.load %arg11[%c192_104, %c0_105] : memref<256x128xbf16, #tpu.memory_space<vmem>>, vector<64x128xbf16>
    %cst_106 = arith.constant dense<0.000000e+00> : vector<16x128xf32>
    %140 = tpu.matmul %138, %139, %cst_106 {dimension_numbers = #tpu.dot_dimension_numbers<[1], [0], [0], [1], [0, 0, 1, 1], [], []>} : vector<16x64xbf16>, vector<64x128xbf16>, vector<16x128xf32> -> vector<16x128xf32>
    %141 = arith.addf %130, %140 : vector<16x128xf32>
    %cst_107 = arith.constant 0.000000e+00 : f32
    %142 = vector.broadcast %cst_107 : f32 to vector<16x128xf32>
    %143 = arith.maximumf %141, %142 : vector<16x128xf32>
    %144 = arith.truncf %143 : vector<16x128xf32> to vector<16x128xbf16>
    %c0_108 = arith.constant 0 : index
    %c0_109 = arith.constant 0 : index
    %145 = vector.load %arg13[%c0_108, %c0_109] : memref<128x128xbf16, #tpu.memory_space<vmem>>, vector<128x128xbf16>
    %cst_110 = arith.constant dense<0.000000e+00> : vector<16x128xf32>
    %146 = tpu.matmul %144, %145, %cst_110 {dimension_numbers = #tpu.dot_dimension_numbers<[1], [0], [0], [1], [0, 0, 1, 1], [], []>} : vector<16x128xbf16>, vector<128x128xbf16>, vector<16x128xf32> -> vector<16x128xf32>
    %c0_111 = arith.constant 0 : index
    %c0_112 = arith.constant 0 : index
    %147 = vector.load %arg14[%c0_111, %c0_112] : memref<1x128xf32, #tpu.memory_space<vmem>>, vector<1x128xf32>
    %148 = vector.broadcast %147 : vector<1x128xf32> to vector<16x128xf32>
    %149 = arith.addf %146, %148 : vector<16x128xf32>
    %c0_113 = arith.constant 0 : index
    %c0_114 = arith.constant 0 : index
    %150 = vector.load %arg15[%c0_113, %c0_114] : memref<16x128xf32, #tpu.memory_space<vmem>>, vector<16x128xf32>
    tpu.vector_store %arg15[%c0_113, %c0_114], %149 {strides = array<i32>} : memref<16x128xf32, #tpu.memory_space<vmem>>, vector<16x128xf32>,
    return
  }
  func.func @transform_0(%arg0: i32) -> (i32, i32) {
    %c0_i32 = arith.constant 0 : i32
    %c0_i32_0 = arith.constant 0 : i32
    return %arg0, %c0_i32 : i32, i32
  }
  func.func @transform_1(%arg0: i32) -> (i32, i32) {
    %c0_i32 = arith.constant 0 : i32
    %c0_i32_0 = arith.constant 0 : i32
    return %arg0, %c0_i32 : i32, i32
  }
  func.func @transform_2(%arg0: i32) -> (i32, i32) {
    %c0_i32 = arith.constant 0 : i32
    %c0_i32_0 = arith.constant 0 : i32
    %c0_i32_1 = arith.constant 0 : i32
    return %c0_i32, %c0_i32_0 : i32, i32
  }
  func.func @transform_3(%arg0: i32) -> (i32, i32) {
    %c0_i32 = arith.constant 0 : i32
    %c0_i32_0 = arith.constant 0 : i32
    %c0_i32_1 = arith.constant 0 : i32
    return %c0_i32, %c0_i32_0 : i32, i32
  }
  func.func @transform_4(%arg0: i32) -> (i32, i32) {
    %c0_i32 = arith.constant 0 : i32
    %c0_i32_0 = arith.constant 0 : i32
    %c0_i32_1 = arith.constant 0 : i32
    return %c0_i32, %c0_i32_0 : i32, i32
  }
  func.func @transform_5(%arg0: i32) -> (i32, i32) {
    %c0_i32 = arith.constant 0 : i32
    %c0_i32_0 = arith.constant 0 : i32
    %c0_i32_1 = arith.constant 0 : i32
    return %c0_i32, %c0_i32_0 : i32, i32
  }
  func.func @transform_6(%arg0: i32) -> (i32, i32) {
    %c0_i32 = arith.constant 0 : i32
    %c0_i32_0 = arith.constant 0 : i32
    %c0_i32_1 = arith.constant 0 : i32
    return %c0_i32, %c0_i32_0 : i32, i32
  }
  func.func @transform_7(%arg0: i32) -> (i32, i32) {
    %c0_i32 = arith.constant 0 : i32
    %c0_i32_0 = arith.constant 0 : i32
    %c0_i32_1 = arith.constant 0 : i32
    return %c0_i32, %c0_i32_0 : i32, i32
  }
  func.func @transform_8(%arg0: i32) -> (i32, i32) {
    %c0_i32 = arith.constant 0 : i32
    %c0_i32_0 = arith.constant 0 : i32
    %c0_i32_1 = arith.constant 0 : i32
    return %c0_i32, %c0_i32_0 : i32, i32
  }
  func.func @transform_9(%arg0: i32) -> (i32, i32) {
    %c0_i32 = arith.constant 0 : i32
    %c0_i32_0 = arith.constant 0 : i32
    %c0_i32_1 = arith.constant 0 : i32
    return %c0_i32, %c0_i32_0 : i32, i32
  }
  func.func @transform_10(%arg0: i32) -> (i32, i32) {
    %c0_i32 = arith.constant 0 : i32
    %c0_i32_0 = arith.constant 0 : i32
    %c0_i32_1 = arith.constant 0 : i32
    return %c0_i32, %c0_i32_0 : i32, i32
  }
  func.func @transform_11(%arg0: i32) -> (i32, i32) {
    %c0_i32 = arith.constant 0 : i32
    %c0_i32_0 = arith.constant 0 : i32
    %c0_i32_1 = arith.constant 0 : i32
    return %c0_i32, %c0_i32_0 : i32, i32
  }
  func.func @transform_12(%arg0: i32) -> (i32, i32) {
    %c0_i32 = arith.constant 0 : i32
    %c0_i32_0 = arith.constant 0 : i32
    %c0_i32_1 = arith.constant 0 : i32
    return %c0_i32, %c0_i32_0 : i32, i32
  }
  func.func @transform_13(%arg0: i32) -> (i32, i32) {
    %c0_i32 = arith.constant 0 : i32
    %c0_i32_0 = arith.constant 0 : i32
    %c0_i32_1 = arith.constant 0 : i32
    return %c0_i32, %c0_i32_0 : i32, i32
  }
  func.func @transform_14(%arg0: i32) -> (i32, i32) {
    %c0_i32 = arith.constant 0 : i32
    %c0_i32_0 = arith.constant 0 : i32
    return %arg0, %c0_i32 : i32, i32
  }
}

</mosaic_0001>

<llo_original>
// kernel: critic_forward.1
$region0: #{critic_forward.1}
  #allocation0 [shape = 'u32[]', space=smem, size = 0x4, offset = 0x4, fixed_abs, tag = 'smem constant byte address 0x4 - core index']
  #allocation1 [shape = 'u32[144,128]{1,0:T(1,128)}', space=vmem, size = 0x12000, scoped, tag = 'internal scratch']
  #allocation2 [shape = 'bf16[16,576]{1,0:T(16,128)(2,1)}', space=vmem, size = 0x5000, scoped, tag = 'scratch operand']
  %s0 = inlined_call_operand.vmem [shape: f32[16,8], index: 0, kind: input, shape index: {}]
  %s1 = inlined_call_operand.vmem [shape: f32[16,1024], index: 1, kind: input, shape index: {}]
  %s2 = inlined_call_operand.vmem [shape: f32[8,32], index: 2, kind: input, shape index: {}]
  %s3 = inlined_call_operand.vmem [shape: f32[1,32], index: 3, kind: input, shape index: {}]
  %s4 = inlined_call_operand.vmem [shape: bf16[128,64], index: 4, kind: input, shape index: {}]
  %s5 = inlined_call_operand.vmem [shape: bf16[192,64], index: 5, kind: input, shape index: {}]
  %s6 = inlined_call_operand.vmem [shape: f32[1,64], index: 6, kind: input, shape index: {}]
  %s7 = inlined_call_operand.vmem [shape: bf16[192,64], index: 7, kind: input, shape index: {}]
  %s8 = inlined_call_operand.vmem [shape: f32[1,64], index: 8, kind: input, shape index: {}]
  %s9 = inlined_call_operand.vmem [shape: bf16[32,128], index: 9, kind: input, shape index: {}]
  %s10 = inlined_call_operand.vmem [shape: bf16[256,128], index: 10, kind: input, shape index: {}]
  %s11 = inlined_call_operand.vmem [shape: f32[1,128], index: 11, kind: input, shape index: {}]
  %s12 = inlined_call_operand.vmem [shape: bf16[128,128], index: 12, kind: input, shape index: {}]
  %s13 = inlined_call_operand.vmem [shape: f32[1,128], index: 13, kind: input, shape index: {}]
  %s14 = inlined_call_operand.vmem [shape: f32[16,128], index: 14, kind: output, shape index: {}]
  %s15 = sld [smem:[#allocation0]]
  $region66: #{critic_forward.1} parent=0
    _
  %s17 = ssub.s32 1, %s15
  %s18 = scalar_select 0, %s17, %s15
  // Predicated region
  $region2: #{critic_forward.1} parent=0 // pred_check
    _
  $region3: #{critic_forward.1} parent=0 // pred_check_branch
    %20 = sbr.rel (0) target = $region5
  $region4: #{critic_forward.1} parent=0 // pred_region
    _
  $region5: #{critic_forward.1} parent=0 // pred_fallthru
    _
  // Predicated region
  $region6: #{critic_forward.1} parent=0 // pred_check
    _
  $region7: #{critic_forward.1} parent=0 // pred_check_branch
    %22 = sbr.rel (0) target = $region9
  $region8: #{critic_forward.1} parent=0 // pred_region
    _
  $region9: #{critic_forward.1} parent=0 // pred_fallthru
    _
  // Predicated region
  $region10: #{critic_forward.1} parent=0 // pred_check
    _
  $region11: #{critic_forward.1} parent=0 // pred_check_branch
    %24 = sbr.rel (0) target = $region13
  $region12: #{critic_forward.1} parent=0 // pred_region
    _
  $region13: #{critic_forward.1} parent=0 // pred_fallthru
    _
  // Predicated region
  $region14: #{critic_forward.1} parent=0 // pred_check
    _
  $region15: #{critic_forward.1} parent=0 // pred_check_branch
    %26 = sbr.rel (0) target = $region17
  $region16: #{critic_forward.1} parent=0 // pred_region
    _
  $region17: #{critic_forward.1} parent=0 // pred_fallthru
    _
  // Predicated region
  $region18: #{critic_forward.1} parent=0 // pred_check
    _
  $region19: #{critic_forward.1} parent=0 // pred_check_branch
    %28 = sbr.rel (0) target = $region21
  $region20: #{critic_forward.1} parent=0 // pred_region
    _
  $region21: #{critic_forward.1} parent=0 // pred_fallthru
    _
  // Predicated region
  $region22: #{critic_forward.1} parent=0 // pred_check
    _
  $region23: #{critic_forward.1} parent=0 // pred_check_branch
    %30 = sbr.rel (0) target = $region25
  $region24: #{critic_forward.1} parent=0 // pred_region
    _
  $region25: #{critic_forward.1} parent=0 // pred_fallthru
    _
  // Predicated region
  $region26: #{critic_forward.1} parent=0 // pred_check
    _
  $region27: #{critic_forward.1} parent=0 // pred_check_branch
    %32 = sbr.rel (0) target = $region29
  $region28: #{critic_forward.1} parent=0 // pred_region
    _
  $region29: #{critic_forward.1} parent=0 // pred_fallthru
    _
  // Predicated region
  $region30: #{critic_forward.1} parent=0 // pred_check
    _
  $region31: #{critic_forward.1} parent=0 // pred_check_branch
    %34 = sbr.rel (0) target = $region33
  $region32: #{critic_forward.1} parent=0 // pred_region
    _
  $region33: #{critic_forward.1} parent=0 // pred_fallthru
    _
  // Predicated region
  $region34: #{critic_forward.1} parent=0 // pred_check
    _
  $region35: #{critic_forward.1} parent=0 // pred_check_branch
    %36 = sbr.rel (0) target = $region37
  $region36: #{critic_forward.1} parent=0 // pred_region
    _
  $region37: #{critic_forward.1} parent=0 // pred_fallthru
    _
  // Predicated region
  $region38: #{critic_forward.1} parent=0 // pred_check
    _
  $region39: #{critic_forward.1} parent=0 // pred_check_branch
    %38 = sbr.rel (0) target = $region41
  $region40: #{critic_forward.1} parent=0 // pred_region
    _
  $region41: #{critic_forward.1} parent=0 // pred_fallthru
    _
  // Predicated region
  $region42: #{critic_forward.1} parent=0 // pred_check
    _
  $region43: #{critic_forward.1} parent=0 // pred_check_branch
    %40 = sbr.rel (0) target = $region45
  $region44: #{critic_forward.1} parent=0 // pred_region
    _
  $region45: #{critic_forward.1} parent=0 // pred_fallthru
    _
  // Predicated region
  $region46: #{critic_forward.1} parent=0 // pred_check
    _
  $region47: #{critic_forward.1} parent=0 // pred_check_branch
    %42 = sbr.rel (0) target = $region49
  $region48: #{critic_forward.1} parent=0 // pred_region
    _
  $region49: #{critic_forward.1} parent=0 // pred_fallthru
    _
  // Predicated region
  $region50: #{critic_forward.1} parent=0 // pred_check
    _
  $region51: #{critic_forward.1} parent=0 // pred_check_branch
    %44 = sbr.rel (0) target = $region53
  $region52: #{critic_forward.1} parent=0 // pred_region
    _
  $region53: #{critic_forward.1} parent=0 // pred_fallthru
    _
  // Predicated region
  $region54: #{critic_forward.1} parent=0 // pred_check
    _
  $region55: #{critic_forward.1} parent=0 // pred_check_branch
    %46 = sbr.rel (0) target = $region57
  $region56: #{critic_forward.1} parent=0 // pred_region
    _
  $region57: #{critic_forward.1} parent=0 // pred_fallthru
    _
  %v48 = vld [vmem:[%s0] sm:$0xff]
  %v49 = vld [vmem:[%s0 + $0x8] sm:$0xff]
  %v50 = vld [vmem:[%s2] sm:$0xff]
  %v51 = vld [vmem:[%s3] sm:$0x1]
  %v53 = vlaneseq
  %v54 = vshrl.u32 %v53, 7
  %v55 = vsub.s32 0, %v54
  %v56 = vrot.slane %v51, %v55
  %vm58 = vcmask 64512
  %v60 = vsel %vm58, %v48, 0
  %v63 = vsel %vm58, %v49, 0
  %65 = vmatprep.subr.mxu0 0.0
  %66 = vmatpush1.msra.mxu0 %v50
  %67 = vmatprep.subr.mxu0 0.0
  %68 = vmatpush1.msra.mxu0 0.0
  %69 = vmatprep.subr.mxu0 0.0
  %70 = vmatpush1.msra.mxu0 0.0
  %71 = vmatprep.subr.mxu0 0.0
  %72 = vmatpush1.msra.mxu0 0.0
  %73 = vmatprep.subr.mxu0 0.0
  %74 = vmatpush1.msra.mxu0 0.0
  %75 = vmatprep.subr.mxu0 0.0
  %76 = vmatpush1.msra.mxu0 0.0
  %77 = vmatprep.subr.mxu0 0.0
  %78 = vmatpush1.msra.mxu0 0.0
  %79 = vmatprep.subr.mxu0 0.0
  %80 = vmatpush1.msra.mxu0 0.0
  %81 = vmatprep.subr.mxu0 0.0
  %82 = vmatpush1.msra.mxu0 0.0
  %83 = vmatprep.subr.mxu0 0.0
  %84 = vmatpush1.msra.mxu0 0.0
  %85 = vmatprep.subr.mxu0 0.0
  %86 = vmatpush1.msra.mxu0 0.0
  %87 = vmatprep.subr.mxu0 0.0
  %88 = vmatpush1.msra.mxu0 0.0
  %89 = vmatprep.subr.mxu0 0.0
  %90 = vmatpush1.msra.mxu0 0.0
  %91 = vmatprep.subr.mxu0 0.0
  %92 = vmatpush1.msra.mxu0 0.0
  %93 = vmatprep.subr.mxu0 0.0
  %94 = vmatpush1.msra.mxu0 0.0
  %95 = vmatprep.subr.mxu0 0.0
  %96 = vmatpush1.msra.mxu0 0.0
  %97 = vmatprep.subr.mxu0 0.0
  %98 = vmatpush1.msra.mxu0 0.0
  %99 = vmatprep.subr.mxu0 0.0
  %100 = vmatpush1.msra.mxu0 0.0
  %101 = vmatprep.subr.mxu0 0.0
  %102 = vmatpush1.msra.mxu0 0.0
  %103 = vmatprep.subr.mxu0 0.0
  %104 = vmatpush1.msra.mxu0 0.0
  %105 = vmatprep.subr.mxu0 0.0
  %106 = vmatpush1.msra.mxu0 0.0
  %107 = vmatprep.subr.mxu0 0.0
  %108 = vmatpush1.msra.mxu0 0.0
  %109 = vmatprep.subr.mxu0 0.0
  %110 = vmatpush1.msra.mxu0 0.0
  %111 = vmatprep.subr.mxu0 0.0
  %112 = vmatpush1.msra.mxu0 0.0
  %113 = vmatprep.subr.mxu0 0.0
  %114 = vmatpush1.msra.mxu0 0.0
  %115 = vmatprep.subr.mxu0 0.0
  %116 = vmatpush1.msra.mxu0 0.0
  %117 = vmatprep.subr.mxu0 0.0
  %118 = vmatpush1.msra.mxu0 0.0
  %119 = vmatprep.subr.mxu0 0.0
  %120 = vmatpush1.msra.mxu0 0.0
  %121 = vmatprep.subr.mxu0 0.0
  %122 = vmatpush1.msra.mxu0 0.0
  %123 = vmatprep.subr.mxu0 0.0
  %124 = vmatpush1.msra.mxu0 0.0
  %125 = vmatprep.subr.mxu0 0.0
  %126 = vmatpush1.msra.mxu0 0.0
  %127 = vmatprep.subr.mxu0 0.0
  %128 = vmatpush1.msra.mxu0 0.0
  %129 = vmatprep.mubr.f32.mxu0 0.0
  %130 = vmatmul.mubr.f32.gmra.mrb[0].mxu0 %v60
  %v131 = vpop.f32.mrb[0].mxu0
  %v132 = vadd.f32 %v56, %v131
  %v133 = vpop.f32.mrb[0].mxu0
  %134 = vmatprep.mubr.f32.mxu0 0.0
  %135 = vmatmul.mubr.f32.gmra.mrb[0].mxu0 %v63
  %v136 = vpop.f32.mrb[0].mxu0
  %v137 = vadd.f32 %v56, %v136
  %v138 = vpop.f32.mrb[0].mxu0
  %139 = vdwg.mxu0
  %v140 = vmax.f32 %v132, 0.0
  %v141 = vmax.f32 %v137, 0.0
  %v142 = vld [vmem:[%s6] sm:$0x1]
  %vm143 = vcmask 523264
  %144 = vst.msk [vmem:[#allocation2] sm:$0xff] %vm143, 0
  %v145 = vld [vmem:[%s1] sm:$0xff]
  %v146 = vld [vmem:[%s1 + $0x40] sm:$0xff]
  %v147 = vpack.c.bf16 %v146, %v145
  %v148 = vld [vmem:[%s4] sm:$0xf]
  %v149 = vld [vmem:[%s4 + $0x4] sm:$0xf]
  %v150 = vld [vmem:[%s4 + $0x8] sm:$0xf]
  %v151 = vld [vmem:[%s4 + $0xc] sm:$0xf]
  %v152 = vld [vmem:[%s4 + $0x10] sm:$0xf]
  %v153 = vld [vmem:[%s4 + $0x14] sm:$0xf]
  %v154 = vld [vmem:[%s4 + $0x18] sm:$0xf]
  %v155 = vld [vmem:[%s4 + $0x1c] sm:$0xf]
  %v156 = vld [vmem:[%s4 + $0x20] sm:$0xf]
  %v157 = vld [vmem:[%s4 + $0x24] sm:$0xf]
  %v158 = vld [vmem:[%s4 + $0x28] sm:$0xf]
  %v159 = vld [vmem:[%s4 + $0x2c] sm:$0xf]
  %v160 = vld [vmem:[%s4 + $0x30] sm:$0xf]
  %v161 = vld [vmem:[%s4 + $0x34] sm:$0xf]
  %v162 = vld [vmem:[%s4 + $0x38] sm:$0xf]
  %v163 = vld [vmem:[%s4 + $0x3c] sm:$0xf]
  %v165 = vlaneseq
  %v166 = vshrl.u32 %v165, 7
  %v167 = vsub.s32 0, %v166
  %v168 = vrot.slane %v142, %v167
  %v186 = vunpack.c.l.b16 %v148
  %v187 = vunpack.c.l.b16 %v149
  %v188 = vunpack.c.l.b16 %v150
  %v189 = vunpack.c.l.b16 %v151
  %v190 = vunpack.c.l.b16 %v152
  %v191 = vunpack.c.l.b16 %v153
  %v192 = vunpack.c.l.b16 %v154
  %v193 = vunpack.c.l.b16 %v155
  %v194 = vunpack.c.l.b16 %v156
  %v195 = vunpack.c.l.b16 %v157
  %v196 = vunpack.c.l.b16 %v158
  %v197 = vunpack.c.l.b16 %v159
  %v198 = vunpack.c.l.b16 %v160
  %v199 = vunpack.c.l.b16 %v161
  %v200 = vunpack.c.l.b16 %v162
  %v201 = vunpack.c.l.b16 %v163
  %v202 = vpack.c.b16 %v187, %v186
  %v203 = vpack.c.b16 %v189, %v188
  %v204 = vpack.c.b16 %v191, %v190
  %v205 = vpack.c.b16 %v193, %v192
  %v206 = vpack.c.b16 %v195, %v194
  %v207 = vpack.c.b16 %v197, %v196
  %v208 = vpack.c.b16 %v199, %v198
  %v209 = vpack.c.b16 %v201, %v200
  %218 = vmatprep.subr.bf16.mxu0 0
  %219 = vmatpush1.bf16.msra.mxu0 %v202
  %220 = vmatprep.subr.bf16.mxu0 0
  %221 = vmatpush1.bf16.msra.mxu0 %v203
  %222 = vmatprep.subr.bf16.mxu0 0
  %223 = vmatpush1.bf16.msra.mxu0 %v204
  %224 = vmatprep.subr.bf16.mxu0 0
  %225 = vmatpush1.bf16.msra.mxu0 %v205
  %226 = vmatprep.subr.bf16.mxu0 0
  %227 = vmatpush1.bf16.msra.mxu0 %v206
  %228 = vmatprep.subr.bf16.mxu0 0
  %229 = vmatpush1.bf16.msra.mxu0 %v207
  %230 = vmatprep.subr.bf16.mxu0 0
  %231 = vmatpush1.bf16.msra.mxu0 %v208
  %232 = vmatprep.subr.bf16.mxu0 0
  %233 = vmatpush1.bf16.msra.mxu0 %v209
  %234 = vmatprep.subr.bf16.mxu0 0
  %235 = vmatpush1.bf16.msra.mxu0 0
  %236 = vmatprep.subr.bf16.mxu0 0
  %237 = vmatpush1.bf16.msra.mxu0 0
  %238 = vmatprep.subr.bf16.mxu0 0
  %239 = vmatpush1.bf16.msra.mxu0 0
  %240 = vmatprep.subr.bf16.mxu0 0
  %241 = vmatpush1.bf16.msra.mxu0 0
  %242 = vmatprep.subr.bf16.mxu0 0
  %243 = vmatpush1.bf16.msra.mxu0 0
  %244 = vmatprep.subr.bf16.mxu0 0
  %245 = vmatpush1.bf16.msra.mxu0 0
  %246 = vmatprep.subr.bf16.mxu0 0
  %247 = vmatpush1.bf16.msra.mxu0 0
  %248 = vmatprep.subr.bf16.mxu0 0
  %249 = vmatpush1.bf16.msra.mxu0 0
  %250 = vmatprep.mubr.bf16.mxu0 0
  %251 = vmatmul.mubr.bf16.gmra.mrb[0].mxu0 %v147
  %v252 = vpop.f32.mrb[0].mxu0
  %v253 = vadd.f32 %v168, %v252
  %v254 = vpop.f32.mrb[0].mxu0
  %v255 = vpop.f32.mrb[0].mxu0
  %v256 = vadd.f32 %v168, %v255
  %v257 = vpop.f32.mrb[0].mxu0
  %258 = vdwg.mxu0
  %v259 = vmax.f32 %v253, 0.0
  %v260 = vmax.f32 %v256, 0.0
  %v261 = vpack.c.bf16 %v260, %v259
  %263 = vrot.lane.b32.xlu0 %v261, 64
  %v264 = vpop.permute.xlu0 %263
  %vm266 = vcmask 1048064
  %267 = vst.msk [vmem:[#allocation2] sm:$0xff] %vm266, %v264
  %v268 = vld [vmem:[%s1] sm:$0xff]
  %v269 = vld [vmem:[%s1 + $0x8] sm:$0xff]
  %v270 = vld [vmem:[%s1 + $0x40] sm:$0xff]
  %v271 = vld [vmem:[%s1 + $0x48] sm:$0xff]
  %v272 = vpack.c.bf16 %v270, %v268
  %v273 = vpack.c.bf16 %v271, %v269
  %v274 = vld [vmem:[%s5] sm:$0xf]
  %v275 = vld [vmem:[%s5 + $0x4] sm:$0xf]
  %v276 = vld [vmem:[%s5 + $0x8] sm:$0xf]
  %v277 = vld [vmem:[%s5 + $0xc] sm:$0xf]
  %v278 = vld [vmem:[%s5 + $0x10] sm:$0xf]
  %v279 = vld [vmem:[%s5 + $0x14] sm:$0xf]
  %v280 = vld [vmem:[%s5 + $0x18] sm:$0xf]
  %v281 = vld [vmem:[%s5 + $0x1c] sm:$0xf]
  %v282 = vld [vmem:[%s5 + $0x20] sm:$0xf]
  %v283 = vld [vmem:[%s5 + $0x24] sm:$0xf]
  %v284 = vld [vmem:[%s5 + $0x28] sm:$0xf]
  %v285 = vld [vmem:[%s5 + $0x2c] sm:$0xf]
  %v286 = vld [vmem:[%s5 + $0x30] sm:$0xf]
  %v287 = vld [vmem:[%s5 + $0x34] sm:$0xf]
  %v288 = vld [vmem:[%s5 + $0x38] sm:$0xf]
  %v289 = vld [vmem:[%s5 + $0x3c] sm:$0xf]
  %v290 = vld [vmem:[%s5 + $0x40] sm:$0xf]
  %v291 = vld [vmem:[%s5 + $0x44] sm:$0xf]
  %v292 = vld [vmem:[%s5 + $0x48] sm:$0xf]
  %v293 = vld [vmem:[%s5 + $0x4c] sm:$0xf]
  %v294 = vld [vmem:[%s5 + $0x50] sm:$0xf]
  %v295 = vld [vmem:[%s5 + $0x54] sm:$0xf]
  %v296 = vld [vmem:[%s5 + $0x58] sm:$0xf]
  %v297 = vld [vmem:[%s5 + $0x5c] sm:$0xf]
  %300 = vrot.lane.b32.xlu0 %v272, 64
  %v301 = vpop.permute.xlu0 %300
  %302 = vrot.lane.b32.xlu0 %v273, 64
  %v303 = vpop.permute.xlu0 %302
  %vm304 = vcmask 523264
  %v305 = vsel %vm304, %v301, %v303
  %v331 = vunpack.c.l.b16 %v274
  %v332 = vunpack.c.l.b16 %v275
  %v333 = vunpack.c.l.b16 %v276
  %v334 = vunpack.c.l.b16 %v277
  %v335 = vunpack.c.l.b16 %v278
  %v336 = vunpack.c.l.b16 %v279
  %v337 = vunpack.c.l.b16 %v280
  %v338 = vunpack.c.l.b16 %v281
  %v339 = vunpack.c.l.b16 %v282
  %v340 = vunpack.c.l.b16 %v283
  %v341 = vunpack.c.l.b16 %v284
  %v342 = vunpack.c.l.b16 %v285
  %v343 = vunpack.c.l.b16 %v286
  %v344 = vunpack.c.l.b16 %v287
  %v345 = vunpack.c.l.b16 %v288
  %v346 = vunpack.c.l.b16 %v289
  %v347 = vunpack.c.l.b16 %v290
  %v348 = vunpack.c.l.b16 %v291
  %v349 = vunpack.c.l.b16 %v292
  %v350 = vunpack.c.l.b16 %v293
  %v351 = vunpack.c.l.b16 %v294
  %v352 = vunpack.c.l.b16 %v295
  %v353 = vunpack.c.l.b16 %v296
  %v354 = vunpack.c.l.b16 %v297
  %v355 = vpack.c.b16 %v332, %v331
  %v356 = vpack.c.b16 %v334, %v333
  %v357 = vpack.c.b16 %v336, %v335
  %v358 = vpack.c.b16 %v338, %v337
  %v359 = vpack.c.b16 %v340, %v339
  %v360 = vpack.c.b16 %v342, %v341
  %v361 = vpack.c.b16 %v344, %v343
  %v362 = vpack.c.b16 %v346, %v345
  %v363 = vpack.c.b16 %v348, %v347
  %v364 = vpack.c.b16 %v350, %v349
  %v365 = vpack.c.b16 %v352, %v351
  %v366 = vpack.c.b16 %v354, %v353
  %v380 = vsel %vm143, %v303, 0
  %382 = vmatprep.subr.bf16.mxu0 0
  %383 = vmatpush1.bf16.msra.mxu0 %v355
  %384 = vmatprep.subr.bf16.mxu0 0
  %385 = vmatpush1.bf16.msra.mxu0 %v356
  %386 = vmatprep.subr.bf16.mxu0 0
  %387 = vmatpush1.bf16.msra.mxu0 %v357
  %388 = vmatprep.subr.bf16.mxu0 0
  %389 = vmatpush1.bf16.msra.mxu0 %v358
  %390 = vmatprep.subr.bf16.mxu0 0
  %391 = vmatpush1.bf16.msra.mxu0 %v359
  %392 = vmatprep.subr.bf16.mxu0 0
  %393 = vmatpush1.bf16.msra.mxu0 %v360
  %394 = vmatprep.subr.bf16.mxu0 0
  %395 = vmatpush1.bf16.msra.mxu0 %v361
  %396 = vmatprep.subr.bf16.mxu0 0
  %397 = vmatpush1.bf16.msra.mxu0 %v362
  %398 = vmatprep.subr.bf16.mxu0 0
  %399 = vmatpush1.bf16.msra.mxu0 %v363
  %400 = vmatprep.subr.bf16.mxu0 0
  %401 = vmatpush1.bf16.msra.mxu0 %v364
  %402 = vmatprep.subr.bf16.mxu0 0
  %403 = vmatpush1.bf16.msra.mxu0 %v365
  %404 = vmatprep.subr.bf16.mxu0 0
  %405 = vmatpush1.bf16.msra.mxu0 %v366
  %406 = vmatprep.subr.bf16.mxu0 0
  %407 = vmatpush1.bf16.msra.mxu0 0
  %408 = vmatprep.subr.bf16.mxu0 0
  %409 = vmatpush1.bf16.msra.mxu0 0
  %410 = vmatprep.subr.bf16.mxu0 0
  %411 = vmatpush1.bf16.msra.mxu0 0
  %412 = vmatprep.subr.bf16.mxu0 0
  %413 = vmatpush1.bf16.msra.mxu0 0
  %414 = vmatprep.mubr.bf16.mxu0 %v380
  %415 = vmatmul.mubr.bf16.gmra.mrb[0].mxu0 %v305
  %v416 = vpop.f32.mrb[0].mxu0
  %v417 = vadd.f32 %v168, %v416
  %v418 = vpop.f32.mrb[0].mxu0
  %v419 = vpop.f32.mrb[0].mxu0
  %v420 = vadd.f32 %v168, %v419
  %v421 = vpop.f32.mrb[0].mxu0
  %422 = vdwg.mxu0
  %v423 = vmax.f32 %v417, 0.0
  %v424 = vmax.f32 %v420, 0.0
  %v425 = vpack.c.bf16 %v424, %v423
  %426 = vst.msk [vmem:[#allocation2 + $0x8] sm:$0xff] %vm143, %v425
  %v427 = vld [vmem:[%s1 + $0x8] sm:$0xff]
  %v428 = vld [vmem:[%s1 + $0x10] sm:$0xff]
  %v429 = vld [vmem:[%s1 + $0x48] sm:$0xff]
  %v430 = vld [vmem:[%s1 + $0x50] sm:$0xff]
  %v431 = vpack.c.bf16 %v429, %v427
  %v432 = vpack.c.bf16 %v430, %v428
  %v433 = vld [vmem:[%s5] sm:$0xf]
  %v434 = vld [vmem:[%s5 + $0x4] sm:$0xf]
  %v435 = vld [vmem:[%s5 + $0x8] sm:$0xf]
  %v436 = vld [vmem:[%s5 + $0xc] sm:$0xf]
  %v437 = vld [vmem:[%s5 + $0x10] sm:$0xf]
  %v438 = vld [vmem:[%s5 + $0x14] sm:$0xf]
  %v439 = vld [vmem:[%s5 + $0x18] sm:$0xf]
  %v440 = vld [vmem:[%s5 + $0x1c] sm:$0xf]
  %v441 = vld [vmem:[%s5 + $0x20] sm:$0xf]
  %v442 = vld [vmem:[%s5 + $0x24] sm:$0xf]
  %v443 = vld [vmem:[%s5 + $0x28] sm:$0xf]
  %v444 = vld [vmem:[%s5 + $0x2c] sm:$0xf]
  %v445 = vld [vmem:[%s5 + $0x30] sm:$0xf]
  %v446 = vld [vmem:[%s5 + $0x34] sm:$0xf]
  %v447 = vld [vmem:[%s5 + $0x38] sm:$0xf]
  %v448 = vld [vmem:[%s5 + $0x3c] sm:$0xf]
  %v449 = vld [vmem:[%s5 + $0x40] sm:$0xf]
  %v450 = vld [vmem:[%s5 + $0x44] sm:$0xf]
  %v451 = vld [vmem:[%s5 + $0x48] sm:$0xf]
  %v452 = vld [vmem:[%s5 + $0x4c] sm:$0xf]
  %v453 = vld [vmem:[%s5 + $0x50] sm:$0xf]
  %v454 = vld [vmem:[%s5 + $0x54] sm:$0xf]
  %v455 = vld [vmem:[%s5 + $0x58] sm:$0xf]
  %v456 = vld [vmem:[%s5 + $0x5c] sm:$0xf]
  %459 = vrot.lane.b32.xlu0 %v431, 64
  %v460 = vpop.permute.xlu0 %459
  %461 = vrot.lane.b32.xlu0 %v432, 64
  %v462 = vpop.permute.xlu0 %461
  %v463 = vsel %vm304, %v460, %v462
  %v489 = vunpack.c.l.b16 %v433
  %v490 = vunpack.c.l.b16 %v434
  %v491 = vunpack.c.l.b16 %v435
  %v492 = vunpack.c.l.b16 %v436
  %v493 = vunpack.c.l.b16 %v437
  %v494 = vunpack.c.l.b16 %v438
  %v495 = vunpack.c.l.b16 %v439
  %v496 = vunpack.c.l.b16 %v440
  %v497 = vunpack.c.l.b16 %v441
  %v498 = vunpack.c.l.b16 %v442
  %v499 = vunpack.c.l.b16 %v443
  %v500 = vunpack.c.l.b16 %v444
  %v501 = vunpack.c.l.b16 %v445
  %v502 = vunpack.c.l.b16 %v446
  %v503 = vunpack.c.l.b16 %v447
  %v504 = vunpack.c.l.b16 %v448
  %v505 = vunpack.c.l.b16 %v449
  %v506 = vunpack.c.l.b16 %v450
  %v507 = vunpack.c.l.b16 %v451
  %v508 = vunpack.c.l.b16 %v452
  %v509 = vunpack.c.l.b16 %v453
  %v510 = vunpack.c.l.b16 %v454
  %v511 = vunpack.c.l.b16 %v455
  %v512 = vunpack.c.l.b16 %v456
  %v513 = vpack.c.b16 %v490, %v489
  %v514 = vpack.c.b16 %v492, %v491
  %v515 = vpack.c.b16 %v494, %v493
  %v516 = vpack.c.b16 %v496, %v495
  %v517 = vpack.c.b16 %v498, %v497
  %v518 = vpack.c.b16 %v500, %v499
  %v519 = vpack.c.b16 %v502, %v501
  %v520 = vpack.c.b16 %v504, %v503
  %v521 = vpack.c.b16 %v506, %v505
  %v522 = vpack.c.b16 %v508, %v507
  %v523 = vpack.c.b16 %v510, %v509
  %v524 = vpack.c.b16 %v512, %v511
  %v538 = vsel %vm143, %v462, 0
  %540 = vmatprep.subr.bf16.mxu0 0
  %541 = vmatpush1.bf16.msra.mxu0 %v513
  %542 = vmatprep.subr.bf16.mxu0 0
  %543 = vmatpush1.bf16.msra.mxu0 %v514
  %544 = vmatprep.subr.bf16.mxu0 0
  %545 = vmatpush1.bf16.msra.mxu0 %v515
  %546 = vmatprep.subr.bf16.mxu0 0
  %547 = vmatpush1.bf16.msra.mxu0 %v516
  %548 = vmatprep.subr.bf16.mxu0 0
  %549 = vmatpush1.bf16.msra.mxu0 %v517
  %550 = vmatprep.subr.bf16.mxu0 0
  %551 = vmatpush1.bf16.msra.mxu0 %v518
  %552 = vmatprep.subr.bf16.mxu0 0
  %553 = vmatpush1.bf16.msra.mxu0 %v519
  %554 = vmatprep.subr.bf16.mxu0 0
  %555 = vmatpush1.bf16.msra.mxu0 %v520
  %556 = vmatprep.subr.bf16.mxu0 0
  %557 = vmatpush1.bf16.msra.mxu0 %v521
  %558 = vmatprep.subr.bf16.mxu0 0
  %559 = vmatpush1.bf16.msra.mxu0 %v522
  %560 = vmatprep.subr.bf16.mxu0 0
  %561 = vmatpush1.bf16.msra.mxu0 %v523
  %562 = vmatprep.subr.bf16.mxu0 0
  %563 = vmatpush1.bf16.msra.mxu0 %v524
  %564 = vmatprep.subr.bf16.mxu0 0
  %565 = vmatpush1.bf16.msra.mxu0 0
  %566 = vmatprep.subr.bf16.mxu0 0
  %567 = vmatpush1.bf16.msra.mxu0 0
  %568 = vmatprep.subr.bf16.mxu0 0
  %569 = vmatpush1.bf16.msra.mxu0 0
  %570 = vmatprep.subr.bf16.mxu0 0
  %571 = vmatpush1.bf16.msra.mxu0 0
  %572 = vmatprep.mubr.bf16.mxu0 %v538
  %573 = vmatmul.mubr.bf16.gmra.mrb[0].mxu0 %v463
  %v574 = vpop.f32.mrb[0].mxu0
  %v575 = vadd.f32 %v168, %v574
  %v576 = vpop.f32.mrb[0].mxu0
  %v577 = vpop.f32.mrb[0].mxu0
  %v578 = vadd.f32 %v168, %v577
  %v579 = vpop.f32.mrb[0].mxu0
  %580 = vdwg.mxu0
  %v581 = vmax.f32 %v575, 0.0
  %v582 = vmax.f32 %v578, 0.0
  %v583 = vpack.c.bf16 %v582, %v581
  %585 = vrot.lane.b32.xlu0 %v583, 64
  %v586 = vpop.permute.xlu0 %585
  %588 = vst.msk [vmem:[#allocation2 + $0x8] sm:$0xff] %vm266, %v586
  %v589 = vld [vmem:[%s1 + $0x10] sm:$0xff]
  %v590 = vld [vmem:[%s1 + $0x18] sm:$0xff]
  %v591 = vld [vmem:[%s1 + $0x50] sm:$0xff]
  %v592 = vld [vmem:[%s1 + $0x58] sm:$0xff]
  %v593 = vpack.c.bf16 %v591, %v589
  %v594 = vpack.c.bf16 %v592, %v590
  %v595 = vld [vmem:[%s5] sm:$0xf]
  %v596 = vld [vmem:[%s5 + $0x4] sm:$0xf]
  %v597 = vld [vmem:[%s5 + $0x8] sm:$0xf]
  %v598 = vld [vmem:[%s5 + $0xc] sm:$0xf]
  %v599 = vld [vmem:[%s5 + $0x10] sm:$0xf]
  %v600 = vld [vmem:[%s5 + $0x14] sm:$0xf]
  %v601 = vld [vmem:[%s5 + $0x18] sm:$0xf]
  %v602 = vld [vmem:[%s5 + $0x1c] sm:$0xf]
  %v603 = vld [vmem:[%s5 + $0x20] sm:$0xf]
  %v604 = vld [vmem:[%s5 + $0x24] sm:$0xf]
  %v605 = vld [vmem:[%s5 + $0x28] sm:$0xf]
  %v606 = vld [vmem:[%s5 + $0x2c] sm:$0xf]
  %v607 = vld [vmem:[%s5 + $0x30] sm:$0xf]
  %v608 = vld [vmem:[%s5 + $0x34] sm:$0xf]
  %v609 = vld [vmem:[%s5 + $0x38] sm:$0xf]
  %v610 = vld [vmem:[%s5 + $0x3c] sm:$0xf]
  %v611 = vld [vmem:[%s5 + $0x40] sm:$0xf]
  %v612 = vld [vmem:[%s5 + $0x44] sm:$0xf]
  %v613 = vld [vmem:[%s5 + $0x48] sm:$0xf]
  %v614 = vld [vmem:[%s5 + $0x4c] sm:$0xf]
  %v615 = vld [vmem:[%s5 + $0x50] sm:$0xf]
  %v616 = vld [vmem:[%s5 + $0x54] sm:$0xf]
  %v617 = vld [vmem:[%s5 + $0x58] sm:$0xf]
  %v618 = vld [vmem:[%s5 + $0x5c] sm:$0xf]
  %621 = vrot.lane.b32.xlu0 %v593, 64
  %v622 = vpop.permute.xlu0 %621
  %623 = vrot.lane.b32.xlu0 %v594, 64
  %v624 = vpop.permute.xlu0 %623
  %v625 = vsel %vm304, %v622, %v624
  %v651 = vunpack.c.l.b16 %v595
  %v652 = vunpack.c.l.b16 %v596
  %v653 = vunpack.c.l.b16 %v597
  %v654 = vunpack.c.l.b16 %v598
  %v655 = vunpack.c.l.b16 %v599
  %v656 = vunpack.c.l.b16 %v600
  %v657 = vunpack.c.l.b16 %v601
  %v658 = vunpack.c.l.b16 %v602
  %v659 = vunpack.c.l.b16 %v603
  %v660 = vunpack.c.l.b16 %v604
  %v661 = vunpack.c.l.b16 %v605
  %v662 = vunpack.c.l.b16 %v606
  %v663 = vunpack.c.l.b16 %v607
  %v664 = vunpack.c.l.b16 %v608
  %v665 = vunpack.c.l.b16 %v609
  %v666 = vunpack.c.l.b16 %v610
  %v667 = vunpack.c.l.b16 %v611
  %v668 = vunpack.c.l.b16 %v612
  %v669 = vunpack.c.l.b16 %v613
  %v670 = vunpack.c.l.b16 %v614
  %v671 = vunpack.c.l.b16 %v615
  %v672 = vunpack.c.l.b16 %v616
  %v673 = vunpack.c.l.b16 %v617
  %v674 = vunpack.c.l.b16 %v618
  %v675 = vpack.c.b16 %v652, %v651
  %v676 = vpack.c.b16 %v654, %v653
  %v677 = vpack.c.b16 %v656, %v655
  %v678 = vpack.c.b16 %v658, %v657
  %v679 = vpack.c.b16 %v660, %v659
  %v680 = vpack.c.b16 %v662, %v661
  %v681 = vpack.c.b16 %v664, %v663
  %v682 = vpack.c.b16 %v666, %v665
  %v683 = vpack.c.b16 %v668, %v667
  %v684 = vpack.c.b16 %v670, %v669
  %v685 = vpack.c.b16 %v672, %v671
  %v686 = vpack.c.b16 %v674, %v673
  %v700 = vsel %vm143, %v624, 0
  %702 = vmatprep.subr.bf16.mxu0 0
  %703 = vmatpush1.bf16.msra.mxu0 %v675
  %704 = vmatprep.subr.bf16.mxu0 0
  %705 = vmatpush1.bf16.msra.mxu0 %v676
  %706 = vmatprep.subr.bf16.mxu0 0
  %707 = vmatpush1.bf16.msra.mxu0 %v677
  %708 = vmatprep.subr.bf16.mxu0 0
  %709 = vmatpush1.bf16.msra.mxu0 %v678
  %710 = vmatprep.subr.bf16.mxu0 0
  %711 = vmatpush1.bf16.msra.mxu0 %v679
  %712 = vmatprep.subr.bf16.mxu0 0
  %713 = vmatpush1.bf16.msra.mxu0 %v680
  %714 = vmatprep.subr.bf16.mxu0 0
  %715 = vmatpush1.bf16.msra.mxu0 %v681
  %716 = vmatprep.subr.bf16.mxu0 0
  %717 = vmatpush1.bf16.msra.mxu0 %v682
  %718 = vmatprep.subr.bf16.mxu0 0
  %719 = vmatpush1.bf16.msra.mxu0 %v683
  %720 = vmatprep.subr.bf16.mxu0 0
  %721 = vmatpush1.bf16.msra.mxu0 %v684
  %722 = vmatprep.subr.bf16.mxu0 0
  %723 = vmatpush1.bf16.msra.mxu0 %v685
  %724 = vmatprep.subr.bf16.mxu0 0
  %725 = vmatpush1.bf16.msra.mxu0 %v686
  %726 = vmatprep.subr.bf16.mxu0 0
  %727 = vmatpush1.bf16.msra.mxu0 0
  %728 = vmatprep.subr.bf16.mxu0 0
  %729 = vmatpush1.bf16.msra.mxu0 0
  %730 = vmatprep.subr.bf16.mxu0 0
  %731 = vmatpush1.bf16.msra.mxu0 0
  %732 = vmatprep.subr.bf16.mxu0 0
  %733 = vmatpush1.bf16.msra.mxu0 0
  %734 = vmatprep.mubr.bf16.mxu0 %v700
  %735 = vmatmul.mubr.bf16.gmra.mrb[0].mxu0 %v625
  %v736 = vpop.f32.mrb[0].mxu0
  %v737 = vadd.f32 %v168, %v736
  %v738 = vpop.f32.mrb[0].mxu0
  %v739 = vpop.f32.mrb[0].mxu0
  %v740 = vadd.f32 %v168, %v739
  %v741 = vpop.f32.mrb[0].mxu0
  %742 = vdwg.mxu0
  %v743 = vmax.f32 %v737, 0.0
  %v744 = vmax.f32 %v740, 0.0
  %v745 = vpack.c.bf16 %v744, %v743
  %746 = vst.msk [vmem:[#allocation2 + $0x10] sm:$0xff] %vm143, %v745
  %v747 = vld [vmem:[%s1 + $0x18] sm:$0xff]
  %v748 = vld [vmem:[%s1 + $0x20] sm:$0xff]
  %v749 = vld [vmem:[%s1 + $0x58] sm:$0xff]
  %v750 = vld [vmem:[%s1 + $0x60] sm:$0xff]
  %v751 = vpack.c.bf16 %v749, %v747
  %v752 = vpack.c.bf16 %v750, %v748
  %v753 = vld [vmem:[%s5] sm:$0xf]
  %v754 = vld [vmem:[%s5 + $0x4] sm:$0xf]
  %v755 = vld [vmem:[%s5 + $0x8] sm:$0xf]
  %v756 = vld [vmem:[%s5 + $0xc] sm:$0xf]
  %v757 = vld [vmem:[%s5 + $0x10] sm:$0xf]
  %v758 = vld [vmem:[%s5 + $0x14] sm:$0xf]
  %v759 = vld [vmem:[%s5 + $0x18] sm:$0xf]
  %v760 = vld [vmem:[%s5 + $0x1c] sm:$0xf]
  %v761 = vld [vmem:[%s5 + $0x20] sm:$0xf]
  %v762 = vld [vmem:[%s5 + $0x24] sm:$0xf]
  %v763 = vld [vmem:[%s5 + $0x28] sm:$0xf]
  %v764 = vld [vmem:[%s5 + $0x2c] sm:$0xf]
  %v765 = vld [vmem:[%s5 + $0x30] sm:$0xf]
  %v766 = vld [vmem:[%s5 + $0x34] sm:$0xf]
  %v767 = vld [vmem:[%s5 + $0x38] sm:$0xf]
  %v768 = vld [vmem:[%s5 + $0x3c] sm:$0xf]
  %v769 = vld [vmem:[%s5 + $0x40] sm:$0xf]
  %v770 = vld [vmem:[%s5 + $0x44] sm:$0xf]
  %v771 = vld [vmem:[%s5 + $0x48] sm:$0xf]
  %v772 = vld [vmem:[%s5 + $0x4c] sm:$0xf]
  %v773 = vld [vmem:[%s5 + $0x50] sm:$0xf]
  %v774 = vld [vmem:[%s5 + $0x54] sm:$0xf]
  %v775 = vld [vmem:[%s5 + $0x58] sm:$0xf]
  %v776 = vld [vmem:[%s5 + $0x5c] sm:$0xf]
  %779 = vrot.lane.b32.xlu0 %v751, 64
  %v780 = vpop.permute.xlu0 %779
  %781 = vrot.lane.b32.xlu0 %v752, 64
  %v782 = vpop.permute.xlu0 %781
  %v783 = vsel %vm304, %v780, %v782
  %v809 = vunpack.c.l.b16 %v753
  %v810 = vunpack.c.l.b16 %v754
  %v811 = vunpack.c.l.b16 %v755
  %v812 = vunpack.c.l.b16 %v756
  %v813 = vunpack.c.l.b16 %v757
  %v814 = vunpack.c.l.b16 %v758
  %v815 = vunpack.c.l.b16 %v759
  %v816 = vunpack.c.l.b16 %v760
  %v817 = vunpack.c.l.b16 %v761
  %v818 = vunpack.c.l.b16 %v762
  %v819 = vunpack.c.l.b16 %v763
  %v820 = vunpack.c.l.b16 %v764
  %v821 = vunpack.c.l.b16 %v765
  %v822 = vunpack.c.l.b16 %v766
  %v823 = vunpack.c.l.b16 %v767
  %v824 = vunpack.c.l.b16 %v768
  %v825 = vunpack.c.l.b16 %v769
  %v826 = vunpack.c.l.b16 %v770
  %v827 = vunpack.c.l.b16 %v771
  %v828 = vunpack.c.l.b16 %v772
  %v829 = vunpack.c.l.b16 %v773
  %v830 = vunpack.c.l.b16 %v774
  %v831 = vunpack.c.l.b16 %v775
  %v832 = vunpack.c.l.b16 %v776
  %v833 = vpack.c.b16 %v810, %v809
  %v834 = vpack.c.b16 %v812, %v811
  %v835 = vpack.c.b16 %v814, %v813
  %v836 = vpack.c.b16 %v816, %v815
  %v837 = vpack.c.b16 %v818, %v817
  %v838 = vpack.c.b16 %v820, %v819
  %v839 = vpack.c.b16 %v822, %v821
  %v840 = vpack.c.b16 %v824, %v823
  %v841 = vpack.c.b16 %v826, %v825
  %v842 = vpack.c.b16 %v828, %v827
  %v843 = vpack.c.b16 %v830, %v829
  %v844 = vpack.c.b16 %v832, %v831
  %v858 = vsel %vm143, %v782, 0
  %860 = vmatprep.subr.bf16.mxu0 0
  %861 = vmatpush1.bf16.msra.mxu0 %v833
  %862 = vmatprep.subr.bf16.mxu0 0
  %863 = vmatpush1.bf16.msra.mxu0 %v834
  %864 = vmatprep.subr.bf16.mxu0 0
  %865 = vmatpush1.bf16.msra.mxu0 %v835
  %866 = vmatprep.subr.bf16.mxu0 0
  %867 = vmatpush1.bf16.msra.mxu0 %v836
  %868 = vmatprep.subr.bf16.mxu0 0
  %869 = vmatpush1.bf16.msra.mxu0 %v837
  %870 = vmatprep.subr.bf16.mxu0 0
  %871 = vmatpush1.bf16.msra.mxu0 %v838
  %872 = vmatprep.subr.bf16.mxu0 0
  %873 = vmatpush1.bf16.msra.mxu0 %v839
  %874 = vmatprep.subr.bf16.mxu0 0
  %875 = vmatpush1.bf16.msra.mxu0 %v840
  %876 = vmatprep.subr.bf16.mxu0 0
  %877 = vmatpush1.bf16.msra.mxu0 %v841
  %878 = vmatprep.subr.bf16.mxu0 0
  %879 = vmatpush1.bf16.msra.mxu0 %v842
  %880 = vmatprep.subr.bf16.mxu0 0
  %881 = vmatpush1.bf16.msra.mxu0 %v843
  %882 = vmatprep.subr.bf16.mxu0 0
  %883 = vmatpush1.bf16.msra.mxu0 %v844
  %884 = vmatprep.subr.bf16.mxu0 0
  %885 = vmatpush1.bf16.msra.mxu0 0
  %886 = vmatprep.subr.bf16.mxu0 0
  %887 = vmatpush1.bf16.msra.mxu0 0
  %888 = vmatprep.subr.bf16.mxu0 0
  %889 = vmatpush1.bf16.msra.mxu0 0
  %890 = vmatprep.subr.bf16.mxu0 0
  %891 = vmatpush1.bf16.msra.mxu0 0
  %892 = vmatprep.mubr.bf16.mxu0 %v858
  %893 = vmatmul.mubr.bf16.gmra.mrb[0].mxu0 %v783
  %v894 = vpop.f32.mrb[0].mxu0
  %v895 = vadd.f32 %v168, %v894
  %v896 = vpop.f32.mrb[0].mxu0
  %v897 = vpop.f32.mrb[0].mxu0
  %v898 = vadd.f32 %v168, %v897
  %v899 = vpop.f32.mrb[0].mxu0
  %900 = vdwg.mxu0
  %v901 = vmax.f32 %v895, 0.0
  %v902 = vmax.f32 %v898, 0.0
  %v903 = vpack.c.bf16 %v902, %v901
  %905 = vrot.lane.b32.xlu0 %v903, 64
  %v906 = vpop.permute.xlu0 %905
  %908 = vst.msk [vmem:[#allocation2 + $0x10] sm:$0xff] %vm266, %v906
  %v909 = vld [vmem:[%s1 + $0x20] sm:$0xff]
  %v910 = vld [vmem:[%s1 + $0x28] sm:$0xff]
  %v911 = vld [vmem:[%s1 + $0x60] sm:$0xff]
  %v912 = vld [vmem:[%s1 + $0x68] sm:$0xff]
  %v913 = vpack.c.bf16 %v911, %v909
  %v914 = vpack.c.bf16 %v912, %v910
  %v915 = vld [vmem:[%s5] sm:$0xf]
  %v916 = vld [vmem:[%s5 + $0x4] sm:$0xf]
  %v917 = vld [vmem:[%s5 + $0x8] sm:$0xf]
  %v918 = vld [vmem:[%s5 + $0xc] sm:$0xf]
  %v919 = vld [vmem:[%s5 + $0x10] sm:$0xf]
  %v920 = vld [vmem:[%s5 + $0x14] sm:$0xf]
  %v921 = vld [vmem:[%s5 + $0x18] sm:$0xf]
  %v922 = vld [vmem:[%s5 + $0x1c] sm:$0xf]
  %v923 = vld [vmem:[%s5 + $0x20] sm:$0xf]
  %v924 = vld [vmem:[%s5 + $0x24] sm:$0xf]
  %v925 = vld [vmem:[%s5 + $0x28] sm:$0xf]
  %v926 = vld [vmem:[%s5 + $0x2c] sm:$0xf]
  %v927 = vld [vmem:[%s5 + $0x30] sm:$0xf]
  %v928 = vld [vmem:[%s5 + $0x34] sm:$0xf]
  %v929 = vld [vmem:[%s5 + $0x38] sm:$0xf]
  %v930 = vld [vmem:[%s5 + $0x3c] sm:$0xf]
  %v931 = vld [vmem:[%s5 + $0x40] sm:$0xf]
  %v932 = vld [vmem:[%s5 + $0x44] sm:$0xf]
  %v933 = vld [vmem:[%s5 + $0x48] sm:$0xf]
  %v934 = vld [vmem:[%s5 + $0x4c] sm:$0xf]
  %v935 = vld [vmem:[%s5 + $0x50] sm:$0xf]
  %v936 = vld [vmem:[%s5 + $0x54] sm:$0xf]
  %v937 = vld [vmem:[%s5 + $0x58] sm:$0xf]
  %v938 = vld [vmem:[%s5 + $0x5c] sm:$0xf]
  %941 = vrot.lane.b32.xlu0 %v913, 64
  %v942 = vpop.permute.xlu0 %941
  %943 = vrot.lane.b32.xlu0 %v914, 64
  %v944 = vpop.permute.xlu0 %943
  %v945 = vsel %vm304, %v942, %v944
  %v971 = vunpack.c.l.b16 %v915
  %v972 = vunpack.c.l.b16 %v916
  %v973 = vunpack.c.l.b16 %v917
  %v974 = vunpack.c.l.b16 %v918
  %v975 = vunpack.c.l.b16 %v919
  %v976 = vunpack.c.l.b16 %v920
  %v977 = vunpack.c.l.b16 %v921
  %v978 = vunpack.c.l.b16 %v922
  %v979 = vunpack.c.l.b16 %v923
  %v980 = vunpack.c.l.b16 %v924
  %v981 = vunpack.c.l.b16 %v925
  %v982 = vunpack.c.l.b16 %v926
  %v983 = vunpack.c.l.b16 %v927
  %v984 = vunpack.c.l.b16 %v928
  %v985 = vunpack.c.l.b16 %v929
  %v986 = vunpack.c.l.b16 %v930
  %v987 = vunpack.c.l.b16 %v931
  %v988 = vunpack.c.l.b16 %v932
  %v989 = vunpack.c.l.b16 %v933
  %v990 = vunpack.c.l.b16 %v934
  %v991 = vunpack.c.l.b16 %v935
  %v992 = vunpack.c.l.b16 %v936
  %v993 = vunpack.c.l.b16 %v937
  %v994 = vunpack.c.l.b16 %v938
  %v995 = vpack.c.b16 %v972, %v971
  %v996 = vpack.c.b16 %v974, %v973
  %v997 = vpack.c.b16 %v976, %v975
  %v998 = vpack.c.b16 %v978, %v977
  %v999 = vpack.c.b16 %v980, %v979
  %v1000 = vpack.c.b16 %v982, %v981
  %v1001 = vpack.c.b16 %v984, %v983
  %v1002 = vpack.c.b16 %v986, %v985
  %v1003 = vpack.c.b16 %v988, %v987
  %v1004 = vpack.c.b16 %v990, %v989
  %v1005 = vpack.c.b16 %v992, %v991
  %v1006 = vpack.c.b16 %v994, %v993
  %v1020 = vsel %vm143, %v944, 0
  %1022 = vmatprep.subr.bf16.mxu0 0
  %1023 = vmatpush1.bf16.msra.mxu0 %v995
  %1024 = vmatprep.subr.bf16.mxu0 0
  %1025 = vmatpush1.bf16.msra.mxu0 %v996
  %1026 = vmatprep.subr.bf16.mxu0 0
  %1027 = vmatpush1.bf16.msra.mxu0 %v997
  %1028 = vmatprep.subr.bf16.mxu0 0
  %1029 = vmatpush1.bf16.msra.mxu0 %v998
  %1030 = vmatprep.subr.bf16.mxu0 0
  %1031 = vmatpush1.bf16.msra.mxu0 %v999
  %1032 = vmatprep.subr.bf16.mxu0 0
  %1033 = vmatpush1.bf16.msra.mxu0 %v1000
  %1034 = vmatprep.subr.bf16.mxu0 0
  %1035 = vmatpush1.bf16.msra.mxu0 %v1001
  %1036 = vmatprep.subr.bf16.mxu0 0
  %1037 = vmatpush1.bf16.msra.mxu0 %v1002
  %1038 = vmatprep.subr.bf16.mxu0 0
  %1039 = vmatpush1.bf16.msra.mxu0 %v1003
  %1040 = vmatprep.subr.bf16.mxu0 0
  %1041 = vmatpush1.bf16.msra.mxu0 %v1004
  %1042 = vmatprep.subr.bf16.mxu0 0
  %1043 = vmatpush1.bf16.msra.mxu0 %v1005
  %1044 = vmatprep.subr.bf16.mxu0 0
  %1045 = vmatpush1.bf16.msra.mxu0 %v1006
  %1046 = vmatprep.subr.bf16.mxu0 0
  %1047 = vmatpush1.bf16.msra.mxu0 0
  %1048 = vmatprep.subr.bf16.mxu0 0
  %1049 = vmatpush1.bf16.msra.mxu0 0
  %1050 = vmatprep.subr.bf16.mxu0 0
  %1051 = vmatpush1.bf16.msra.mxu0 0
  %1052 = vmatprep.subr.bf16.mxu0 0
  %1053 = vmatpush1.bf16.msra.mxu0 0
  %1054 = vmatprep.mubr.bf16.mxu0 %v1020
  %1055 = vmatmul.mubr.bf16.gmra.mrb[0].mxu0 %v945
  %v1056 = vpop.f32.mrb[0].mxu0
  %v1057 = vadd.f32 %v168, %v1056
  %v1058 = vpop.f32.mrb[0].mxu0
  %v1059 = vpop.f32.mrb[0].mxu0
  %v1060 = vadd.f32 %v168, %v1059
  %v1061 = vpop.f32.mrb[0].mxu0
  %1062 = vdwg.mxu0
  %v1063 = vmax.f32 %v1057, 0.0
  %v1064 = vmax.f32 %v1060, 0.0
  %v1065 = vpack.c.bf16 %v1064, %v1063
  %1066 = vst.msk [vmem:[#allocation2 + $0x18] sm:$0xff] %vm143, %v1065
  %v1067 = vld [vmem:[%s1 + $0x28] sm:$0xff]
  %v1068 = vld [vmem:[%s1 + $0x30] sm:$0xff]
  %v1069 = vld [vmem:[%s1 + $0x68] sm:$0xff]
  %v1070 = vld [vmem:[%s1 + $0x70] sm:$0xff]
  %v1071 = vpack.c.bf16 %v1069, %v1067
  %v1072 = vpack.c.bf16 %v1070, %v1068
  %v1073 = vld [vmem:[%s5] sm:$0xf]
  %v1074 = vld [vmem:[%s5 + $0x4] sm:$0xf]
  %v1075 = vld [vmem:[%s5 + $0x8] sm:$0xf]
  %v1076 = vld [vmem:[%s5 + $0xc] sm:$0xf]
  %v1077 = vld [vmem:[%s5 + $0x10] sm:$0xf]
  %v1078 = vld [vmem:[%s5 + $0x14] sm:$0xf]
  %v1079 = vld [vmem:[%s5 + $0x18] sm:$0xf]
  %v1080 = vld [vmem:[%s5 + $0x1c] sm:$0xf]
  %v1081 = vld [vmem:[%s5 + $0x20] sm:$0xf]
  %v1082 = vld [vmem:[%s5 + $0x24] sm:$0xf]
  %v1083 = vld [vmem:[%s5 + $0x28] sm:$0xf]
  %v1084 = vld [vmem:[%s5 + $0x2c] sm:$0xf]
  %v1085 = vld [vmem:[%s5 + $0x30] sm:$0xf]
  %v1086 = vld [vmem:[%s5 + $0x34] sm:$0xf]
  %v1087 = vld [vmem:[%s5 + $0x38] sm:$0xf]
  %v1088 = vld [vmem:[%s5 + $0x3c] sm:$0xf]
  %v1089 = vld [vmem:[%s5 + $0x40] sm:$0xf]
  %v1090 = vld [vmem:[%s5 + $0x44] sm:$0xf]
  %v1091 = vld [vmem:[%s5 + $0x48] sm:$0xf]
  %v1092 = vld [vmem:[%s5 + $0x4c] sm:$0xf]
  %v1093 = vld [vmem:[%s5 + $0x50] sm:$0xf]
  %v1094 = vld [vmem:[%s5 + $0x54] sm:$0xf]
  %v1095 = vld [vmem:[%s5 + $0x58] sm:$0xf]
  %v1096 = vld [vmem:[%s5 + $0x5c] sm:$0xf]
  %1099 = vrot.lane.b32.xlu0 %v1071, 64
  %v1100 = vpop.permute.xlu0 %1099
  %1101 = vrot.lane.b32.xlu0 %v1072, 64
  %v1102 = vpop.permute.xlu0 %1101
  %v1103 = vsel %vm304, %v1100, %v1102
  %v1129 = vunpack.c.l.b16 %v1073
  %v1130 = vunpack.c.l.b16 %v1074
  %v1131 = vunpack.c.l.b16 %v1075
  %v1132 = vunpack.c.l.b16 %v1076
  %v1133 = vunpack.c.l.b16 %v1077
  %v1134 = vunpack.c.l.b16 %v1078
  %v1135 = vunpack.c.l.b16 %v1079
  %v1136 = vunpack.c.l.b16 %v1080
  %v1137 = vunpack.c.l.b16 %v1081
  %v1138 = vunpack.c.l.b16 %v1082
  %v1139 = vunpack.c.l.b16 %v1083
  %v1140 = vunpack.c.l.b16 %v1084
  %v1141 = vunpack.c.l.b16 %v1085
  %v1142 = vunpack.c.l.b16 %v1086
  %v1143 = vunpack.c.l.b16 %v1087
  %v1144 = vunpack.c.l.b16 %v1088
  %v1145 = vunpack.c.l.b16 %v1089
  %v1146 = vunpack.c.l.b16 %v1090
  %v1147 = vunpack.c.l.b16 %v1091
  %v1148 = vunpack.c.l.b16 %v1092
  %v1149 = vunpack.c.l.b16 %v1093
  %v1150 = vunpack.c.l.b16 %v1094
  %v1151 = vunpack.c.l.b16 %v1095
  %v1152 = vunpack.c.l.b16 %v1096
  %v1153 = vpack.c.b16 %v1130, %v1129
  %v1154 = vpack.c.b16 %v1132, %v1131
  %v1155 = vpack.c.b16 %v1134, %v1133
  %v1156 = vpack.c.b16 %v1136, %v1135
  %v1157 = vpack.c.b16 %v1138, %v1137
  %v1158 = vpack.c.b16 %v1140, %v1139
  %v1159 = vpack.c.b16 %v1142, %v1141
  %v1160 = vpack.c.b16 %v1144, %v1143
  %v1161 = vpack.c.b16 %v1146, %v1145
  %v1162 = vpack.c.b16 %v1148, %v1147
  %v1163 = vpack.c.b16 %v1150, %v1149
  %v1164 = vpack.c.b16 %v1152, %v1151
  %v1178 = vsel %vm143, %v1102, 0
  %1180 = vmatprep.subr.bf16.mxu0 0
  %1181 = vmatpush1.bf16.msra.mxu0 %v1153
  %1182 = vmatprep.subr.bf16.mxu0 0
  %1183 = vmatpush1.bf16.msra.mxu0 %v1154
  %1184 = vmatprep.subr.bf16.mxu0 0
  %1185 = vmatpush1.bf16.msra.mxu0 %v1155
  %1186 = vmatprep.subr.bf16.mxu0 0
  %1187 = vmatpush1.bf16.msra.mxu0 %v1156
  %1188 = vmatprep.subr.bf16.mxu0 0
  %1189 = vmatpush1.bf16.msra.mxu0 %v1157
  %1190 = vmatprep.subr.bf16.mxu0 0
  %1191 = vmatpush1.bf16.msra.mxu0 %v1158
  %1192 = vmatprep.subr.bf16.mxu0 0
  %1193 = vmatpush1.bf16.msra.mxu0 %v1159
  %1194 = vmatprep.subr.bf16.mxu0 0
  %1195 = vmatpush1.bf16.msra.mxu0 %v1160
  %1196 = vmatprep.subr.bf16.mxu0 0
  %1197 = vmatpush1.bf16.msra.mxu0 %v1161
  %1198 = vmatprep.subr.bf16.mxu0 0
  %1199 = vmatpush1.bf16.msra.mxu0 %v1162
  %1200 = vmatprep.subr.bf16.mxu0 0
  %1201 = vmatpush1.bf16.msra.mxu0 %v1163
  %1202 = vmatprep.subr.bf16.mxu0 0
  %1203 = vmatpush1.bf16.msra.mxu0 %v1164
  %1204 = vmatprep.subr.bf16.mxu0 0
  %1205 = vmatpush1.bf16.msra.mxu0 0
  %1206 = vmatprep.subr.bf16.mxu0 0
  %1207 = vmatpush1.bf16.msra.mxu0 0
  %1208 = vmatprep.subr.bf16.mxu0 0
  %1209 = vmatpush1.bf16.msra.mxu0 0
  %1210 = vmatprep.subr.bf16.mxu0 0
  %1211 = vmatpush1.bf16.msra.mxu0 0
  %1212 = vmatprep.mubr.bf16.mxu0 %v1178
  %1213 = vmatmul.mubr.bf16.gmra.mrb[0].mxu0 %v1103
  %v1214 = vpop.f32.mrb[0].mxu0
  %v1215 = vadd.f32 %v168, %v1214
  %v1216 = vpop.f32.mrb[0].mxu0
  %v1217 = vpop.f32.mrb[0].mxu0
  %v1218 = vadd.f32 %v168, %v1217
  %v1219 = vpop.f32.mrb[0].mxu0
  %1220 = vdwg.mxu0
  %v1221 = vmax.f32 %v1215, 0.0
  %v1222 = vmax.f32 %v1218, 0.0
  %v1223 = vpack.c.bf16 %v1222, %v1221
  %1225 = vrot.lane.b32.xlu0 %v1223, 64
  %v1226 = vpop.permute.xlu0 %1225
  %1228 = vst.msk [vmem:[#allocation2 + $0x18] sm:$0xff] %vm266, %v1226
  %v1229 = vld [vmem:[%s1 + $0x30] sm:$0xff]
  %v1230 = vld [vmem:[%s1 + $0x38] sm:$0xff]
  %v1231 = vld [vmem:[%s1 + $0x70] sm:$0xff]
  %v1232 = vld [vmem:[%s1 + $0x78] sm:$0xff]
  %v1233 = vpack.c.bf16 %v1231, %v1229
  %v1234 = vpack.c.bf16 %v1232, %v1230
  %v1235 = vld [vmem:[%s5] sm:$0xf]
  %v1236 = vld [vmem:[%s5 + $0x4] sm:$0xf]
  %v1237 = vld [vmem:[%s5 + $0x8] sm:$0xf]
  %v1238 = vld [vmem:[%s5 + $0xc] sm:$0xf]
  %v1239 = vld [vmem:[%s5 + $0x10] sm:$0xf]
  %v1240 = vld [vmem:[%s5 + $0x14] sm:$0xf]
  %v1241 = vld [vmem:[%s5 + $0x18] sm:$0xf]
  %v1242 = vld [vmem:[%s5 + $0x1c] sm:$0xf]
  %v1243 = vld [vmem:[%s5 + $0x20] sm:$0xf]
  %v1244 = vld [vmem:[%s5 + $0x24] sm:$0xf]
  %v1245 = vld [vmem:[%s5 + $0x28] sm:$0xf]
  %v1246 = vld [vmem:[%s5 + $0x2c] sm:$0xf]
  %v1247 = vld [vmem:[%s5 + $0x30] sm:$0xf]
  %v1248 = vld [vmem:[%s5 + $0x34] sm:$0xf]
  %v1249 = vld [vmem:[%s5 + $0x38] sm:$0xf]
  %v1250 = vld [vmem:[%s5 + $0x3c] sm:$0xf]
  %v1251 = vld [vmem:[%s5 + $0x40] sm:$0xf]
  %v1252 = vld [vmem:[%s5 + $0x44] sm:$0xf]
  %v1253 = vld [vmem:[%s5 + $0x48] sm:$0xf]
  %v1254 = vld [vmem:[%s5 + $0x4c] sm:$0xf]
  %v1255 = vld [vmem:[%s5 + $0x50] sm:$0xf]
  %v1256 = vld [vmem:[%s5 + $0x54] sm:$0xf]
  %v1257 = vld [vmem:[%s5 + $0x58] sm:$0xf]
  %v1258 = vld [vmem:[%s5 + $0x5c] sm:$0xf]
  %1261 = vrot.lane.b32.xlu0 %v1233, 64
  %v1262 = vpop.permute.xlu0 %1261
  %1263 = vrot.lane.b32.xlu0 %v1234, 64
  %v1264 = vpop.permute.xlu0 %1263
  %v1265 = vsel %vm304, %v1262, %v1264
  %v1291 = vunpack.c.l.b16 %v1235
  %v1292 = vunpack.c.l.b16 %v1236
  %v1293 = vunpack.c.l.b16 %v1237
  %v1294 = vunpack.c.l.b16 %v1238
  %v1295 = vunpack.c.l.b16 %v1239
  %v1296 = vunpack.c.l.b16 %v1240
  %v1297 = vunpack.c.l.b16 %v1241
  %v1298 = vunpack.c.l.b16 %v1242
  %v1299 = vunpack.c.l.b16 %v1243
  %v1300 = vunpack.c.l.b16 %v1244
  %v1301 = vunpack.c.l.b16 %v1245
  %v1302 = vunpack.c.l.b16 %v1246
  %v1303 = vunpack.c.l.b16 %v1247
  %v1304 = vunpack.c.l.b16 %v1248
  %v1305 = vunpack.c.l.b16 %v1249
  %v1306 = vunpack.c.l.b16 %v1250
  %v1307 = vunpack.c.l.b16 %v1251
  %v1308 = vunpack.c.l.b16 %v1252
  %v1309 = vunpack.c.l.b16 %v1253
  %v1310 = vunpack.c.l.b16 %v1254
  %v1311 = vunpack.c.l.b16 %v1255
  %v1312 = vunpack.c.l.b16 %v1256
  %v1313 = vunpack.c.l.b16 %v1257
  %v1314 = vunpack.c.l.b16 %v1258
  %v1315 = vpack.c.b16 %v1292, %v1291
  %v1316 = vpack.c.b16 %v1294, %v1293
  %v1317 = vpack.c.b16 %v1296, %v1295
  %v1318 = vpack.c.b16 %v1298, %v1297
  %v1319 = vpack.c.b16 %v1300, %v1299
  %v1320 = vpack.c.b16 %v1302, %v1301
  %v1321 = vpack.c.b16 %v1304, %v1303
  %v1322 = vpack.c.b16 %v1306, %v1305
  %v1323 = vpack.c.b16 %v1308, %v1307
  %v1324 = vpack.c.b16 %v1310, %v1309
  %v1325 = vpack.c.b16 %v1312, %v1311
  %v1326 = vpack.c.b16 %v1314, %v1313
  %v1340 = vsel %vm143, %v1264, 0
  %1342 = vmatprep.subr.bf16.mxu0 0
  %1343 = vmatpush1.bf16.msra.mxu0 %v1315
  %1344 = vmatprep.subr.bf16.mxu0 0
  %1345 = vmatpush1.bf16.msra.mxu0 %v1316
  %1346 = vmatprep.subr.bf16.mxu0 0
  %1347 = vmatpush1.bf16.msra.mxu0 %v1317
  %1348 = vmatprep.subr.bf16.mxu0 0
  %1349 = vmatpush1.bf16.msra.mxu0 %v1318
  %1350 = vmatprep.subr.bf16.mxu0 0
  %1351 = vmatpush1.bf16.msra.mxu0 %v1319
  %1352 = vmatprep.subr.bf16.mxu0 0
  %1353 = vmatpush1.bf16.msra.mxu0 %v1320
  %1354 = vmatprep.subr.bf16.mxu0 0
  %1355 = vmatpush1.bf16.msra.mxu0 %v1321
  %1356 = vmatprep.subr.bf16.mxu0 0
  %1357 = vmatpush1.bf16.msra.mxu0 %v1322
  %1358 = vmatprep.subr.bf16.mxu0 0
  %1359 = vmatpush1.bf16.msra.mxu0 %v1323
  %1360 = vmatprep.subr.bf16.mxu0 0
  %1361 = vmatpush1.bf16.msra.mxu0 %v1324
  %1362 = vmatprep.subr.bf16.mxu0 0
  %1363 = vmatpush1.bf16.msra.mxu0 %v1325
  %1364 = vmatprep.subr.bf16.mxu0 0
  %1365 = vmatpush1.bf16.msra.mxu0 %v1326
  %1366 = vmatprep.subr.bf16.mxu0 0
  %1367 = vmatpush1.bf16.msra.mxu0 0
  %1368 = vmatprep.subr.bf16.mxu0 0
  %1369 = vmatpush1.bf16.msra.mxu0 0
  %1370 = vmatprep.subr.bf16.mxu0 0
  %1371 = vmatpush1.bf16.msra.mxu0 0
  %1372 = vmatprep.subr.bf16.mxu0 0
  %1373 = vmatpush1.bf16.msra.mxu0 0
  %1374 = vmatprep.mubr.bf16.mxu0 %v1340
  %1375 = vmatmul.mubr.bf16.gmra.mrb[0].mxu0 %v1265
  %v1376 = vpop.f32.mrb[0].mxu0
  %v1377 = vadd.f32 %v168, %v1376
  %v1378 = vpop.f32.mrb[0].mxu0
  %v1379 = vpop.f32.mrb[0].mxu0
  %v1380 = vadd.f32 %v168, %v1379
  %v1381 = vpop.f32.mrb[0].mxu0
  %1382 = vdwg.mxu0
  %v1383 = vmax.f32 %v1377, 0.0
  %v1384 = vmax.f32 %v1380, 0.0
  %v1385 = vpack.c.bf16 %v1384, %v1383
  %1386 = vst.msk [vmem:[#allocation2 + $0x20] sm:$0xff] %vm143, %v1385
  %v1387 = vld [vmem:[%s8] sm:$0x1]
  %v1388 = vpack.c.bf16 %v141, %v140
  %v1389 = vld [vmem:[%s9] sm:$0xf]
  %v1390 = vld [vmem:[%s9 + $0x4] sm:$0xf]
  %v1391 = vld [vmem:[%s9 + $0x8] sm:$0xf]
  %v1392 = vld [vmem:[%s9 + $0xc] sm:$0xf]
  %v1393 = vld [vmem:[%s11] sm:$0x1]
  %v1395 = vlaneseq
  %v1396 = vshrl.u32 %v1395, 7
  %v1397 = vsub.s32 0, %v1396
  %v1398 = vrot.slane %v1393, %v1397
  %v1404 = vunpack.c.l.b16 %v1389
  %v1405 = vunpack.c.l.b16 %v1390
  %v1406 = vunpack.c.l.b16 %v1391
  %v1407 = vunpack.c.l.b16 %v1392
  %v1408 = vpack.c.b16 %v1405, %v1404
  %v1409 = vpack.c.b16 %v1407, %v1406
  %vm1412 = vcmask 261120
  %v1414 = vsel %vm1412, %v1388, 0
  %1416 = vmatprep.subr.bf16.mxu0 0
  %1417 = vmatpush1.bf16.msra.mxu0 %v1408
  %1418 = vmatprep.subr.bf16.mxu0 0
  %1419 = vmatpush1.bf16.msra.mxu0 %v1409
  %1420 = vmatprep.subr.bf16.mxu0 0
  %1421 = vmatpush1.bf16.msra.mxu0 0
  %1422 = vmatprep.subr.bf16.mxu0 0
  %1423 = vmatpush1.bf16.msra.mxu0 0
  %1424 = vmatprep.subr.bf16.mxu0 0
  %1425 = vmatpush1.bf16.msra.mxu0 0
  %1426 = vmatprep.subr.bf16.mxu0 0
  %1427 = vmatpush1.bf16.msra.mxu0 0
  %1428 = vmatprep.subr.bf16.mxu0 0
  %1429 = vmatpush1.bf16.msra.mxu0 0
  %1430 = vmatprep.subr.bf16.mxu0 0
  %1431 = vmatpush1.bf16.msra.mxu0 0
  %1432 = vmatprep.subr.bf16.mxu0 0
  %1433 = vmatpush1.bf16.msra.mxu0 0
  %1434 = vmatprep.subr.bf16.mxu0 0
  %1435 = vmatpush1.bf16.msra.mxu0 0
  %1436 = vmatprep.subr.bf16.mxu0 0
  %1437 = vmatpush1.bf16.msra.mxu0 0
  %1438 = vmatprep.subr.bf16.mxu0 0
  %1439 = vmatpush1.bf16.msra.mxu0 0
  %1440 = vmatprep.subr.bf16.mxu0 0
  %1441 = vmatpush1.bf16.msra.mxu0 0
  %1442 = vmatprep.subr.bf16.mxu0 0
  %1443 = vmatpush1.bf16.msra.mxu0 0
  %1444 = vmatprep.subr.bf16.mxu0 0
  %1445 = vmatpush1.bf16.msra.mxu0 0
  %1446 = vmatprep.subr.bf16.mxu0 0
  %1447 = vmatpush1.bf16.msra.mxu0 0
  %1448 = vmatprep.mubr.bf16.mxu0 0
  %1449 = vmatmul.mubr.bf16.gmra.mrb[0].mxu0 %v1414
  %v1450 = vpop.f32.mrb[0].mxu0
  %v1451 = vadd.f32 %v1398, %v1450
  %v1452 = vpop.f32.mrb[0].mxu0
  %v1453 = vpop.f32.mrb[0].mxu0
  %v1454 = vadd.f32 %v1398, %v1453
  %v1455 = vpop.f32.mrb[0].mxu0
  %1456 = vdwg.mxu0
  %v1457 = vld [vmem:[#allocation2] sm:$0xff]
  %v1458 = vld [vmem:[#allocation2 + $0x8] sm:$0xff]
  %v1459 = vld [vmem:[%s7] sm:$0xf]
  %v1460 = vld [vmem:[%s7 + $0x4] sm:$0xf]
  %v1461 = vld [vmem:[%s7 + $0x8] sm:$0xf]
  %v1462 = vld [vmem:[%s7 + $0xc] sm:$0xf]
  %v1463 = vld [vmem:[%s7 + $0x10] sm:$0xf]
  %v1464 = vld [vmem:[%s7 + $0x14] sm:$0xf]
  %v1465 = vld [vmem:[%s7 + $0x18] sm:$0xf]
  %v1466 = vld [vmem:[%s7 + $0x1c] sm:$0xf]
  %v1467 = vld [vmem:[%s7 + $0x20] sm:$0xf]
  %v1468 = vld [vmem:[%s7 + $0x24] sm:$0xf]
  %v1469 = vld [vmem:[%s7 + $0x28] sm:$0xf]
  %v1470 = vld [vmem:[%s7 + $0x2c] sm:$0xf]
  %v1471 = vld [vmem:[%s7 + $0x30] sm:$0xf]
  %v1472 = vld [vmem:[%s7 + $0x34] sm:$0xf]
  %v1473 = vld [vmem:[%s7 + $0x38] sm:$0xf]
  %v1474 = vld [vmem:[%s7 + $0x3c] sm:$0xf]
  %v1475 = vld [vmem:[%s7 + $0x40] sm:$0xf]
  %v1476 = vld [vmem:[%s7 + $0x44] sm:$0xf]
  %v1477 = vld [vmem:[%s7 + $0x48] sm:$0xf]
  %v1478 = vld [vmem:[%s7 + $0x4c] sm:$0xf]
  %v1479 = vld [vmem:[%s7 + $0x50] sm:$0xf]
  %v1480 = vld [vmem:[%s7 + $0x54] sm:$0xf]
  %v1481 = vld [vmem:[%s7 + $0x58] sm:$0xf]
  %v1482 = vld [vmem:[%s7 + $0x5c] sm:$0xf]
  %v1484 = vlaneseq
  %v1485 = vshrl.u32 %v1484, 7
  %v1486 = vsub.s32 0, %v1485
  %v1487 = vrot.slane %v1387, %v1486
  %v1513 = vunpack.c.l.b16 %v1459
  %v1514 = vunpack.c.l.b16 %v1460
  %v1515 = vunpack.c.l.b16 %v1461
  %v1516 = vunpack.c.l.b16 %v1462
  %v1517 = vunpack.c.l.b16 %v1463
  %v1518 = vunpack.c.l.b16 %v1464
  %v1519 = vunpack.c.l.b16 %v1465
  %v1520 = vunpack.c.l.b16 %v1466
  %v1521 = vunpack.c.l.b16 %v1467
  %v1522 = vunpack.c.l.b16 %v1468
  %v1523 = vunpack.c.l.b16 %v1469
  %v1524 = vunpack.c.l.b16 %v1470
  %v1525 = vunpack.c.l.b16 %v1471
  %v1526 = vunpack.c.l.b16 %v1472
  %v1527 = vunpack.c.l.b16 %v1473
  %v1528 = vunpack.c.l.b16 %v1474
  %v1529 = vunpack.c.l.b16 %v1475
  %v1530 = vunpack.c.l.b16 %v1476
  %v1531 = vunpack.c.l.b16 %v1477
  %v1532 = vunpack.c.l.b16 %v1478
  %v1533 = vunpack.c.l.b16 %v1479
  %v1534 = vunpack.c.l.b16 %v1480
  %v1535 = vunpack.c.l.b16 %v1481
  %v1536 = vunpack.c.l.b16 %v1482
  %v1537 = vpack.c.b16 %v1514, %v1513
  %v1538 = vpack.c.b16 %v1516, %v1515
  %v1539 = vpack.c.b16 %v1518, %v1517
  %v1540 = vpack.c.b16 %v1520, %v1519
  %v1541 = vpack.c.b16 %v1522, %v1521
  %v1542 = vpack.c.b16 %v1524, %v1523
  %v1543 = vpack.c.b16 %v1526, %v1525
  %v1544 = vpack.c.b16 %v1528, %v1527
  %v1545 = vpack.c.b16 %v1530, %v1529
  %v1546 = vpack.c.b16 %v1532, %v1531
  %v1547 = vpack.c.b16 %v1534, %v1533
  %v1548 = vpack.c.b16 %v1536, %v1535
  %v1562 = vsel %vm143, %v1458, 0
  %1564 = vmatprep.subr.bf16.mxu0 0
  %1565 = vmatpush1.bf16.msra.mxu0 %v1537
  %1566 = vmatprep.subr.bf16.mxu0 0
  %1567 = vmatpush1.bf16.msra.mxu0 %v1538
  %1568 = vmatprep.subr.bf16.mxu0 0
  %1569 = vmatpush1.bf16.msra.mxu0 %v1539
  %1570 = vmatprep.subr.bf16.mxu0 0
  %1571 = vmatpush1.bf16.msra.mxu0 %v1540
  %1572 = vmatprep.subr.bf16.mxu0 0
  %1573 = vmatpush1.bf16.msra.mxu0 %v1541
  %1574 = vmatprep.subr.bf16.mxu0 0
  %1575 = vmatpush1.bf16.msra.mxu0 %v1542
  %1576 = vmatprep.subr.bf16.mxu0 0
  %1577 = vmatpush1.bf16.msra.mxu0 %v1543
  %1578 = vmatprep.subr.bf16.mxu0 0
  %1579 = vmatpush1.bf16.msra.mxu0 %v1544
  %1580 = vmatprep.subr.bf16.mxu0 0
  %1581 = vmatpush1.bf16.msra.mxu0 %v1545
  %1582 = vmatprep.subr.bf16.mxu0 0
  %1583 = vmatpush1.bf16.msra.mxu0 %v1546
  %1584 = vmatprep.subr.bf16.mxu0 0
  %1585 = vmatpush1.bf16.msra.mxu0 %v1547
  %1586 = vmatprep.subr.bf16.mxu0 0
  %1587 = vmatpush1.bf16.msra.mxu0 %v1548
  %1588 = vmatprep.subr.bf16.mxu0 0
  %1589 = vmatpush1.bf16.msra.mxu0 0
  %1590 = vmatprep.subr.bf16.mxu0 0
  %1591 = vmatpush1.bf16.msra.mxu0 0
  %1592 = vmatprep.subr.bf16.mxu0 0
  %1593 = vmatpush1.bf16.msra.mxu0 0
  %1594 = vmatprep.subr.bf16.mxu0 0
  %1595 = vmatpush1.bf16.msra.mxu0 0
  %1596 = vmatprep.mubr.bf16.mxu0 %v1562
  %1597 = vmatmul.mubr.bf16.gmra.mrb[0].mxu0 %v1457
  %v1598 = vpop.f32.mrb[0].mxu0
  %v1599 = vadd.f32 %v1487, %v1598
  %v1600 = vpop.f32.mrb[0].mxu0
  %v1601 = vpop.f32.mrb[0].mxu0
  %v1602 = vadd.f32 %v1487, %v1601
  %v1603 = vpop.f32.mrb[0].mxu0
  %1604 = vdwg.mxu0
  %v1605 = vmax.f32 %v1599, 0.0
  %v1606 = vmax.f32 %v1602, 0.0
  %v1607 = vpack.c.bf16 %v1606, %v1605
  %v1608 = vld [vmem:[%s10] sm:$0xf]
  %v1609 = vld [vmem:[%s10 + $0x4] sm:$0xf]
  %v1610 = vld [vmem:[%s10 + $0x8] sm:$0xf]
  %v1611 = vld [vmem:[%s10 + $0xc] sm:$0xf]
  %v1612 = vld [vmem:[%s10 + $0x10] sm:$0xf]
  %v1613 = vld [vmem:[%s10 + $0x14] sm:$0xf]
  %v1614 = vld [vmem:[%s10 + $0x18] sm:$0xf]
  %v1615 = vld [vmem:[%s10 + $0x1c] sm:$0xf]
  %v1624 = vunpack.c.l.b16 %v1608
  %v1625 = vunpack.c.l.b16 %v1609
  %v1626 = vunpack.c.l.b16 %v1610
  %v1627 = vunpack.c.l.b16 %v1611
  %v1628 = vunpack.c.l.b16 %v1612
  %v1629 = vunpack.c.l.b16 %v1613
  %v1630 = vunpack.c.l.b16 %v1614
  %v1631 = vunpack.c.l.b16 %v1615
  %v1632 = vpack.c.b16 %v1625, %v1624
  %v1633 = vpack.c.b16 %v1627, %v1626
  %v1634 = vpack.c.b16 %v1629, %v1628
  %v1635 = vpack.c.b16 %v1631, %v1630
  %v1641 = vsel %vm143, %v1607, 0
  %1643 = vmatprep.subr.bf16.mxu0 0
  %1644 = vmatpush1.bf16.msra.mxu0 %v1632
  %1645 = vmatprep.subr.bf16.mxu0 0
  %1646 = vmatpush1.bf16.msra.mxu0 %v1633
  %1647 = vmatprep.subr.bf16.mxu0 0
  %1648 = vmatpush1.bf16.msra.mxu0 %v1634
  %1649 = vmatprep.subr.bf16.mxu0 0
  %1650 = vmatpush1.bf16.msra.mxu0 %v1635
  %1651 = vmatprep.subr.bf16.mxu0 0
  %1652 = vmatpush1.bf16.msra.mxu0 0
  %1653 = vmatprep.subr.bf16.mxu0 0
  %1654 = vmatpush1.bf16.msra.mxu0 0
  %1655 = vmatprep.subr.bf16.mxu0 0
  %1656 = vmatpush1.bf16.msra.mxu0 0
  %1657 = vmatprep.subr.bf16.mxu0 0
  %1658 = vmatpush1.bf16.msra.mxu0 0
  %1659 = vmatprep.subr.bf16.mxu0 0
  %1660 = vmatpush1.bf16.msra.mxu0 0
  %1661 = vmatprep.subr.bf16.mxu0 0
  %1662 = vmatpush1.bf16.msra.mxu0 0
  %1663 = vmatprep.subr.bf16.mxu0 0
  %1664 = vmatpush1.bf16.msra.mxu0 0
  %1665 = vmatprep.subr.bf16.mxu0 0
  %1666 = vmatpush1.bf16.msra.mxu0 0
  %1667 = vmatprep.subr.bf16.mxu0 0
  %1668 = vmatpush1.bf16.msra.mxu0 0
  %1669 = vmatprep.subr.bf16.mxu0 0
  %1670 = vmatpush1.bf16.msra.mxu0 0
  %1671 = vmatprep.subr.bf16.mxu0 0
  %1672 = vmatpush1.bf16.msra.mxu0 0
  %1673 = vmatprep.subr.bf16.mxu0 0
  %1674 = vmatpush1.bf16.msra.mxu0 0
  %1675 = vmatprep.mubr.bf16.mxu0 0
  %1676 = vmatmul.mubr.bf16.gmra.mrb[0].mxu0 %v1641
  %v1677 = vpop.f32.mrb[0].mxu0
  %v1678 = vadd.f32 0.0, %v1677
  %v1679 = vpop.f32.mrb[0].mxu0
  %v1680 = vpop.f32.mrb[0].mxu0
  %v1681 = vadd.f32 0.0, %v1680
  %v1682 = vpop.f32.mrb[0].mxu0
  %1683 = vdwg.mxu0
  %v1684 = vadd.f32 %v1451, %v1678
  %v1685 = vadd.f32 %v1454, %v1681
  %v1686 = vld [vmem:[#allocation2 + $0x8] sm:$0xff]
  %v1687 = vld [vmem:[#allocation2 + $0x10] sm:$0xff]
  %v1689 = vsel %vm143, %v1687, 0
  %1691 = vmatprep.subr.bf16.mxu0 0
  %1692 = vmatpush1.bf16.msra.mxu0 %v1537
  %1693 = vmatprep.subr.bf16.mxu0 0
  %1694 = vmatpush1.bf16.msra.mxu0 %v1538
  %1695 = vmatprep.subr.bf16.mxu0 0
  %1696 = vmatpush1.bf16.msra.mxu0 %v1539
  %1697 = vmatprep.subr.bf16.mxu0 0
  %1698 = vmatpush1.bf16.msra.mxu0 %v1540
  %1699 = vmatprep.subr.bf16.mxu0 0
  %1700 = vmatpush1.bf16.msra.mxu0 %v1541
  %1701 = vmatprep.subr.bf16.mxu0 0
  %1702 = vmatpush1.bf16.msra.mxu0 %v1542
  %1703 = vmatprep.subr.bf16.mxu0 0
  %1704 = vmatpush1.bf16.msra.mxu0 %v1543
  %1705 = vmatprep.subr.bf16.mxu0 0
  %1706 = vmatpush1.bf16.msra.mxu0 %v1544
  %1707 = vmatprep.subr.bf16.mxu0 0
  %1708 = vmatpush1.bf16.msra.mxu0 %v1545
  %1709 = vmatprep.subr.bf16.mxu0 0
  %1710 = vmatpush1.bf16.msra.mxu0 %v1546
  %1711 = vmatprep.subr.bf16.mxu0 0
  %1712 = vmatpush1.bf16.msra.mxu0 %v1547
  %1713 = vmatprep.subr.bf16.mxu0 0
  %1714 = vmatpush1.bf16.msra.mxu0 %v1548
  %1715 = vmatprep.subr.bf16.mxu0 0
  %1716 = vmatpush1.bf16.msra.mxu0 0
  %1717 = vmatprep.subr.bf16.mxu0 0
  %1718 = vmatpush1.bf16.msra.mxu0 0
  %1719 = vmatprep.subr.bf16.mxu0 0
  %1720 = vmatpush1.bf16.msra.mxu0 0
  %1721 = vmatprep.subr.bf16.mxu0 0
  %1722 = vmatpush1.bf16.msra.mxu0 0
  %1723 = vmatprep.mubr.bf16.mxu0 %v1689
  %1724 = vmatmul.mubr.bf16.gmra.mrb[0].mxu0 %v1686
  %v1725 = vpop.f32.mrb[0].mxu0
  %v1726 = vadd.f32 %v1487, %v1725
  %v1727 = vpop.f32.mrb[0].mxu0
  %v1728 = vpop.f32.mrb[0].mxu0
  %v1729 = vadd.f32 %v1487, %v1728
  %v1730 = vpop.f32.mrb[0].mxu0
  %1731 = vdwg.mxu0
  %v1732 = vmax.f32 %v1726, 0.0
  %v1733 = vmax.f32 %v1729, 0.0
  %v1734 = vpack.c.bf16 %v1733, %v1732
  %v1735 = vld [vmem:[%s10 + $0x20] sm:$0xf]
  %v1736 = vld [vmem:[%s10 + $0x24] sm:$0xf]
  %v1737 = vld [vmem:[%s10 + $0x28] sm:$0xf]
  %v1738 = vld [vmem:[%s10 + $0x2c] sm:$0xf]
  %v1739 = vld [vmem:[%s10 + $0x30] sm:$0xf]
  %v1740 = vld [vmem:[%s10 + $0x34] sm:$0xf]
  %v1741 = vld [vmem:[%s10 + $0x38] sm:$0xf]
  %v1742 = vld [vmem:[%s10 + $0x3c] sm:$0xf]
  %v1751 = vunpack.c.l.b16 %v1735
  %v1752 = vunpack.c.l.b16 %v1736
  %v1753 = vunpack.c.l.b16 %v1737
  %v1754 = vunpack.c.l.b16 %v1738
  %v1755 = vunpack.c.l.b16 %v1739
  %v1756 = vunpack.c.l.b16 %v1740
  %v1757 = vunpack.c.l.b16 %v1741
  %v1758 = vunpack.c.l.b16 %v1742
  %v1759 = vpack.c.b16 %v1752, %v1751
  %v1760 = vpack.c.b16 %v1754, %v1753
  %v1761 = vpack.c.b16 %v1756, %v1755
  %v1762 = vpack.c.b16 %v1758, %v1757
  %v1768 = vsel %vm143, %v1734, 0
  %1770 = vmatprep.subr.bf16.mxu0 0
  %1771 = vmatpush1.bf16.msra.mxu0 %v1759
  %1772 = vmatprep.subr.bf16.mxu0 0
  %1773 = vmatpush1.bf16.msra.mxu0 %v1760
  %1774 = vmatprep.subr.bf16.mxu0 0
  %1775 = vmatpush1.bf16.msra.mxu0 %v1761
  %1776 = vmatprep.subr.bf16.mxu0 0
  %1777 = vmatpush1.bf16.msra.mxu0 %v1762
  %1778 = vmatprep.subr.bf16.mxu0 0
  %1779 = vmatpush1.bf16.msra.mxu0 0
  %1780 = vmatprep.subr.bf16.mxu0 0
  %1781 = vmatpush1.bf16.msra.mxu0 0
  %1782 = vmatprep.subr.bf16.mxu0 0
  %1783 = vmatpush1.bf16.msra.mxu0 0
  %1784 = vmatprep.subr.bf16.mxu0 0
  %1785 = vmatpush1.bf16.msra.mxu0 0
  %1786 = vmatprep.subr.bf16.mxu0 0
  %1787 = vmatpush1.bf16.msra.mxu0 0
  %1788 = vmatprep.subr.bf16.mxu0 0
  %1789 = vmatpush1.bf16.msra.mxu0 0
  %1790 = vmatprep.subr.bf16.mxu0 0
  %1791 = vmatpush1.bf16.msra.mxu0 0
  %1792 = vmatprep.subr.bf16.mxu0 0
  %1793 = vmatpush1.bf16.msra.mxu0 0
  %1794 = vmatprep.subr.bf16.mxu0 0
  %1795 = vmatpush1.bf16.msra.mxu0 0
  %1796 = vmatprep.subr.bf16.mxu0 0
  %1797 = vmatpush1.bf16.msra.mxu0 0
  %1798 = vmatprep.subr.bf16.mxu0 0
  %1799 = vmatpush1.bf16.msra.mxu0 0
  %1800 = vmatprep.subr.bf16.mxu0 0
  %1801 = vmatpush1.bf16.msra.mxu0 0
  %1802 = vmatprep.mubr.bf16.mxu0 0
  %1803 = vmatmul.mubr.bf16.gmra.mrb[0].mxu0 %v1768
  %v1804 = vpop.f32.mrb[0].mxu0
  %v1805 = vadd.f32 0.0, %v1804
  %v1806 = vpop.f32.mrb[0].mxu0
  %v1807 = vpop.f32.mrb[0].mxu0
  %v1808 = vadd.f32 0.0, %v1807
  %v1809 = vpop.f32.mrb[0].mxu0
  %1810 = vdwg.mxu0
  %v1811 = vadd.f32 %v1684, %v1805
  %v1812 = vadd.f32 %v1685, %v1808
  %v1813 = vld [vmem:[#allocation2 + $0x10] sm:$0xff]
  %v1814 = vld [vmem:[#allocation2 + $0x18] sm:$0xff]
  %v1816 = vsel %vm143, %v1814, 0
  %1818 = vmatprep.subr.bf16.mxu0 0
  %1819 = vmatpush1.bf16.msra.mxu0 %v1537
  %1820 = vmatprep.subr.bf16.mxu0 0
  %1821 = vmatpush1.bf16.msra.mxu0 %v1538
  %1822 = vmatprep.subr.bf16.mxu0 0
  %1823 = vmatpush1.bf16.msra.mxu0 %v1539
  %1824 = vmatprep.subr.bf16.mxu0 0
  %1825 = vmatpush1.bf16.msra.mxu0 %v1540
  %1826 = vmatprep.subr.bf16.mxu0 0
  %1827 = vmatpush1.bf16.msra.mxu0 %v1541
  %1828 = vmatprep.subr.bf16.mxu0 0
  %1829 = vmatpush1.bf16.msra.mxu0 %v1542
  %1830 = vmatprep.subr.bf16.mxu0 0
  %1831 = vmatpush1.bf16.msra.mxu0 %v1543
  %1832 = vmatprep.subr.bf16.mxu0 0
  %1833 = vmatpush1.bf16.msra.mxu0 %v1544
  %1834 = vmatprep.subr.bf16.mxu0 0
  %1835 = vmatpush1.bf16.msra.mxu0 %v1545
  %1836 = vmatprep.subr.bf16.mxu0 0
  %1837 = vmatpush1.bf16.msra.mxu0 %v1546
  %1838 = vmatprep.subr.bf16.mxu0 0
  %1839 = vmatpush1.bf16.msra.mxu0 %v1547
  %1840 = vmatprep.subr.bf16.mxu0 0
  %1841 = vmatpush1.bf16.msra.mxu0 %v1548
  %1842 = vmatprep.subr.bf16.mxu0 0
  %1843 = vmatpush1.bf16.msra.mxu0 0
  %1844 = vmatprep.subr.bf16.mxu0 0
  %1845 = vmatpush1.bf16.msra.mxu0 0
  %1846 = vmatprep.subr.bf16.mxu0 0
  %1847 = vmatpush1.bf16.msra.mxu0 0
  %1848 = vmatprep.subr.bf16.mxu0 0
  %1849 = vmatpush1.bf16.msra.mxu0 0
  %1850 = vmatprep.mubr.bf16.mxu0 %v1816
  %1851 = vmatmul.mubr.bf16.gmra.mrb[0].mxu0 %v1813
  %v1852 = vpop.f32.mrb[0].mxu0
  %v1853 = vadd.f32 %v1487, %v1852
  %v1854 = vpop.f32.mrb[0].mxu0
  %v1855 = vpop.f32.mrb[0].mxu0
  %v1856 = vadd.f32 %v1487, %v1855
  %v1857 = vpop.f32.mrb[0].mxu0
  %1858 = vdwg.mxu0
  %v1859 = vmax.f32 %v1853, 0.0
  %v1860 = vmax.f32 %v1856, 0.0
  %v1861 = vpack.c.bf16 %v1860, %v1859
  %v1862 = vld [vmem:[%s10 + $0x40] sm:$0xf]
  %v1863 = vld [vmem:[%s10 + $0x44] sm:$0xf]
  %v1864 = vld [vmem:[%s10 + $0x48] sm:$0xf]
  %v1865 = vld [vmem:[%s10 + $0x4c] sm:$0xf]
  %v1866 = vld [vmem:[%s10 + $0x50] sm:$0xf]
  %v1867 = vld [vmem:[%s10 + $0x54] sm:$0xf]
  %v1868 = vld [vmem:[%s10 + $0x58] sm:$0xf]
  %v1869 = vld [vmem:[%s10 + $0x5c] sm:$0xf]
  %v1878 = vunpack.c.l.b16 %v1862
  %v1879 = vunpack.c.l.b16 %v1863
  %v1880 = vunpack.c.l.b16 %v1864
  %v1881 = vunpack.c.l.b16 %v1865
  %v1882 = vunpack.c.l.b16 %v1866
  %v1883 = vunpack.c.l.b16 %v1867
  %v1884 = vunpack.c.l.b16 %v1868
  %v1885 = vunpack.c.l.b16 %v1869
  %v1886 = vpack.c.b16 %v1879, %v1878
  %v1887 = vpack.c.b16 %v1881, %v1880
  %v1888 = vpack.c.b16 %v1883, %v1882
  %v1889 = vpack.c.b16 %v1885, %v1884
  %v1895 = vsel %vm143, %v1861, 0
  %1897 = vmatprep.subr.bf16.mxu0 0
  %1898 = vmatpush1.bf16.msra.mxu0 %v1886
  %1899 = vmatprep.subr.bf16.mxu0 0
  %1900 = vmatpush1.bf16.msra.mxu0 %v1887
  %1901 = vmatprep.subr.bf16.mxu0 0
  %1902 = vmatpush1.bf16.msra.mxu0 %v1888
  %1903 = vmatprep.subr.bf16.mxu0 0
  %1904 = vmatpush1.bf16.msra.mxu0 %v1889
  %1905 = vmatprep.subr.bf16.mxu0 0
  %1906 = vmatpush1.bf16.msra.mxu0 0
  %1907 = vmatprep.subr.bf16.mxu0 0
  %1908 = vmatpush1.bf16.msra.mxu0 0
  %1909 = vmatprep.subr.bf16.mxu0 0
  %1910 = vmatpush1.bf16.msra.mxu0 0
  %1911 = vmatprep.subr.bf16.mxu0 0
  %1912 = vmatpush1.bf16.msra.mxu0 0
  %1913 = vmatprep.subr.bf16.mxu0 0
  %1914 = vmatpush1.bf16.msra.mxu0 0
  %1915 = vmatprep.subr.bf16.mxu0 0
  %1916 = vmatpush1.bf16.msra.mxu0 0
  %1917 = vmatprep.subr.bf16.mxu0 0
  %1918 = vmatpush1.bf16.msra.mxu0 0
  %1919 = vmatprep.subr.bf16.mxu0 0
  %1920 = vmatpush1.bf16.msra.mxu0 0
  %1921 = vmatprep.subr.bf16.mxu0 0
  %1922 = vmatpush1.bf16.msra.mxu0 0
  %1923 = vmatprep.subr.bf16.mxu0 0
  %1924 = vmatpush1.bf16.msra.mxu0 0
  %1925 = vmatprep.subr.bf16.mxu0 0
  %1926 = vmatpush1.bf16.msra.mxu0 0
  %1927 = vmatprep.subr.bf16.mxu0 0
  %1928 = vmatpush1.bf16.msra.mxu0 0
  %1929 = vmatprep.mubr.bf16.mxu0 0
  %1930 = vmatmul.mubr.bf16.gmra.mrb[0].mxu0 %v1895
  %v1931 = vpop.f32.mrb[0].mxu0
  %v1932 = vadd.f32 0.0, %v1931
  %v1933 = vpop.f32.mrb[0].mxu0
  %v1934 = vpop.f32.mrb[0].mxu0
  %v1935 = vadd.f32 0.0, %v1934
  %v1936 = vpop.f32.mrb[0].mxu0
  %1937 = vdwg.mxu0
  %v1938 = vadd.f32 %v1811, %v1932
  %v1939 = vadd.f32 %v1812, %v1935
  %v1940 = vld [vmem:[#allocation2 + $0x18] sm:$0xff]
  %v1941 = vld [vmem:[#allocation2 + $0x20] sm:$0xff]
  %v1943 = vsel %vm143, %v1941, 0
  %1945 = vmatprep.subr.bf16.mxu0 0
  %1946 = vmatpush1.bf16.msra.mxu0 %v1537
  %1947 = vmatprep.subr.bf16.mxu0 0
  %1948 = vmatpush1.bf16.msra.mxu0 %v1538
  %1949 = vmatprep.subr.bf16.mxu0 0
  %1950 = vmatpush1.bf16.msra.mxu0 %v1539
  %1951 = vmatprep.subr.bf16.mxu0 0
  %1952 = vmatpush1.bf16.msra.mxu0 %v1540
  %1953 = vmatprep.subr.bf16.mxu0 0
  %1954 = vmatpush1.bf16.msra.mxu0 %v1541
  %1955 = vmatprep.subr.bf16.mxu0 0
  %1956 = vmatpush1.bf16.msra.mxu0 %v1542
  %1957 = vmatprep.subr.bf16.mxu0 0
  %1958 = vmatpush1.bf16.msra.mxu0 %v1543
  %1959 = vmatprep.subr.bf16.mxu0 0
  %1960 = vmatpush1.bf16.msra.mxu0 %v1544
  %1961 = vmatprep.subr.bf16.mxu0 0
  %1962 = vmatpush1.bf16.msra.mxu0 %v1545
  %1963 = vmatprep.subr.bf16.mxu0 0
  %1964 = vmatpush1.bf16.msra.mxu0 %v1546
  %1965 = vmatprep.subr.bf16.mxu0 0
  %1966 = vmatpush1.bf16.msra.mxu0 %v1547
  %1967 = vmatprep.subr.bf16.mxu0 0
  %1968 = vmatpush1.bf16.msra.mxu0 %v1548
  %1969 = vmatprep.subr.bf16.mxu0 0
  %1970 = vmatpush1.bf16.msra.mxu0 0
  %1971 = vmatprep.subr.bf16.mxu0 0
  %1972 = vmatpush1.bf16.msra.mxu0 0
  %1973 = vmatprep.subr.bf16.mxu0 0
  %1974 = vmatpush1.bf16.msra.mxu0 0
  %1975 = vmatprep.subr.bf16.mxu0 0
  %1976 = vmatpush1.bf16.msra.mxu0 0
  %1977 = vmatprep.mubr.bf16.mxu0 %v1943
  %1978 = vmatmul.mubr.bf16.gmra.mrb[0].mxu0 %v1940
  %v1979 = vpop.f32.mrb[0].mxu0
  %v1980 = vadd.f32 %v1487, %v1979
  %v1981 = vpop.f32.mrb[0].mxu0
  %v1982 = vpop.f32.mrb[0].mxu0
  %v1983 = vadd.f32 %v1487, %v1982
  %v1984 = vpop.f32.mrb[0].mxu0
  %1985 = vdwg.mxu0
  %v1986 = vmax.f32 %v1980, 0.0
  %v1987 = vmax.f32 %v1983, 0.0
  %v1988 = vpack.c.bf16 %v1987, %v1986
  %v1989 = vld [vmem:[%s10 + $0x60] sm:$0xf]
  %v1990 = vld [vmem:[%s10 + $0x64] sm:$0xf]
  %v1991 = vld [vmem:[%s10 + $0x68] sm:$0xf]
  %v1992 = vld [vmem:[%s10 + $0x6c] sm:$0xf]
  %v1993 = vld [vmem:[%s10 + $0x70] sm:$0xf]
  %v1994 = vld [vmem:[%s10 + $0x74] sm:$0xf]
  %v1995 = vld [vmem:[%s10 + $0x78] sm:$0xf]
  %v1996 = vld [vmem:[%s10 + $0x7c] sm:$0xf]
  %v2005 = vunpack.c.l.b16 %v1989
  %v2006 = vunpack.c.l.b16 %v1990
  %v2007 = vunpack.c.l.b16 %v1991
  %v2008 = vunpack.c.l.b16 %v1992
  %v2009 = vunpack.c.l.b16 %v1993
  %v2010 = vunpack.c.l.b16 %v1994
  %v2011 = vunpack.c.l.b16 %v1995
  %v2012 = vunpack.c.l.b16 %v1996
  %v2013 = vpack.c.b16 %v2006, %v2005
  %v2014 = vpack.c.b16 %v2008, %v2007
  %v2015 = vpack.c.b16 %v2010, %v2009
  %v2016 = vpack.c.b16 %v2012, %v2011
  %v2022 = vsel %vm143, %v1988, 0
  %2024 = vmatprep.subr.bf16.mxu0 0
  %2025 = vmatpush1.bf16.msra.mxu0 %v2013
  %2026 = vmatprep.subr.bf16.mxu0 0
  %2027 = vmatpush1.bf16.msra.mxu0 %v2014
  %2028 = vmatprep.subr.bf16.mxu0 0
  %2029 = vmatpush1.bf16.msra.mxu0 %v2015
  %2030 = vmatprep.subr.bf16.mxu0 0
  %2031 = vmatpush1.bf16.msra.mxu0 %v2016
  %2032 = vmatprep.subr.bf16.mxu0 0
  %2033 = vmatpush1.bf16.msra.mxu0 0
  %2034 = vmatprep.subr.bf16.mxu0 0
  %2035 = vmatpush1.bf16.msra.mxu0 0
  %2036 = vmatprep.subr.bf16.mxu0 0
  %2037 = vmatpush1.bf16.msra.mxu0 0
  %2038 = vmatprep.subr.bf16.mxu0 0
  %2039 = vmatpush1.bf16.msra.mxu0 0
  %2040 = vmatprep.subr.bf16.mxu0 0
  %2041 = vmatpush1.bf16.msra.mxu0 0
  %2042 = vmatprep.subr.bf16.mxu0 0
  %2043 = vmatpush1.bf16.msra.mxu0 0
  %2044 = vmatprep.subr.bf16.mxu0 0
  %2045 = vmatpush1.bf16.msra.mxu0 0
  %2046 = vmatprep.subr.bf16.mxu0 0
  %2047 = vmatpush1.bf16.msra.mxu0 0
  %2048 = vmatprep.subr.bf16.mxu0 0
  %2049 = vmatpush1.bf16.msra.mxu0 0
  %2050 = vmatprep.subr.bf16.mxu0 0
  %2051 = vmatpush1.bf16.msra.mxu0 0
  %2052 = vmatprep.subr.bf16.mxu0 0
  %2053 = vmatpush1.bf16.msra.mxu0 0
  %2054 = vmatprep.subr.bf16.mxu0 0
  %2055 = vmatpush1.bf16.msra.mxu0 0
  %2056 = vmatprep.mubr.bf16.mxu0 0
  %2057 = vmatmul.mubr.bf16.gmra.mrb[0].mxu0 %v2022
  %v2058 = vpop.f32.mrb[0].mxu0
  %v2059 = vadd.f32 0.0, %v2058
  %v2060 = vpop.f32.mrb[0].mxu0
  %v2061 = vpop.f32.mrb[0].mxu0
  %v2062 = vadd.f32 0.0, %v2061
  %v2063 = vpop.f32.mrb[0].mxu0
  %2064 = vdwg.mxu0
  %v2065 = vadd.f32 %v1938, %v2059
  %v2066 = vadd.f32 %v1939, %v2062
  %v2067 = vmax.f32 %v2065, 0.0
  %v2068 = vmax.f32 %v2066, 0.0
  %v2069 = vpack.c.bf16 %v2068, %v2067
  %v2070 = vld [vmem:[%s12] sm:$0xf]
  %v2071 = vld [vmem:[%s12 + $0x4] sm:$0xf]
  %v2072 = vld [vmem:[%s12 + $0x8] sm:$0xf]
  %v2073 = vld [vmem:[%s12 + $0xc] sm:$0xf]
  %v2074 = vld [vmem:[%s12 + $0x10] sm:$0xf]
  %v2075 = vld [vmem:[%s12 + $0x14] sm:$0xf]
  %v2076 = vld [vmem:[%s12 + $0x18] sm:$0xf]
  %v2077 = vld [vmem:[%s12 + $0x1c] sm:$0xf]
  %v2078 = vld [vmem:[%s12 + $0x20] sm:$0xf]
  %v2079 = vld [vmem:[%s12 + $0x24] sm:$0xf]
  %v2080 = vld [vmem:[%s12 + $0x28] sm:$0xf]
  %v2081 = vld [vmem:[%s12 + $0x2c] sm:$0xf]
  %v2082 = vld [vmem:[%s12 + $0x30] sm:$0xf]
  %v2083 = vld [vmem:[%s12 + $0x34] sm:$0xf]
  %v2084 = vld [vmem:[%s12 + $0x38] sm:$0xf]
  %v2085 = vld [vmem:[%s12 + $0x3c] sm:$0xf]
  %v2086 = vld [vmem:[%s13] sm:$0x1]
  %v2088 = vlaneseq
  %v2089 = vshrl.u32 %v2088, 7
  %v2090 = vsub.s32 0, %v2089
  %v2091 = vrot.slane %v2086, %v2090
  %v2109 = vunpack.c.l.b16 %v2070
  %v2110 = vunpack.c.l.b16 %v2071
  %v2111 = vunpack.c.l.b16 %v2072
  %v2112 = vunpack.c.l.b16 %v2073
  %v2113 = vunpack.c.l.b16 %v2074
  %v2114 = vunpack.c.l.b16 %v2075
  %v2115 = vunpack.c.l.b16 %v2076
  %v2116 = vunpack.c.l.b16 %v2077
  %v2117 = vunpack.c.l.b16 %v2078
  %v2118 = vunpack.c.l.b16 %v2079
  %v2119 = vunpack.c.l.b16 %v2080
  %v2120 = vunpack.c.l.b16 %v2081
  %v2121 = vunpack.c.l.b16 %v2082
  %v2122 = vunpack.c.l.b16 %v2083
  %v2123 = vunpack.c.l.b16 %v2084
  %v2124 = vunpack.c.l.b16 %v2085
  %v2125 = vpack.c.b16 %v2110, %v2109
  %v2126 = vpack.c.b16 %v2112, %v2111
  %v2127 = vpack.c.b16 %v2114, %v2113
  %v2128 = vpack.c.b16 %v2116, %v2115
  %v2129 = vpack.c.b16 %v2118, %v2117
  %v2130 = vpack.c.b16 %v2120, %v2119
  %v2131 = vpack.c.b16 %v2122, %v2121
  %v2132 = vpack.c.b16 %v2124, %v2123
  %2141 = vmatprep.subr.bf16.mxu0 0
  %2142 = vmatpush1.bf16.msra.mxu0 %v2125
  %2143 = vmatprep.subr.bf16.mxu0 0
  %2144 = vmatpush1.bf16.msra.mxu0 %v2126
  %2145 = vmatprep.subr.bf16.mxu0 0
  %2146 = vmatpush1.bf16.msra.mxu0 %v2127
  %2147 = vmatprep.subr.bf16.mxu0 0
  %2148 = vmatpush1.bf16.msra.mxu0 %v2128
  %2149 = vmatprep.subr.bf16.mxu0 0
  %2150 = vmatpush1.bf16.msra.mxu0 %v2129
  %2151 = vmatprep.subr.bf16.mxu0 0
  %2152 = vmatpush1.bf16.msra.mxu0 %v2130
  %2153 = vmatprep.subr.bf16.mxu0 0
  %2154 = vmatpush1.bf16.msra.mxu0 %v2131
  %2155 = vmatprep.subr.bf16.mxu0 0
  %2156 = vmatpush1.bf16.msra.mxu0 %v2132
  %2157 = vmatprep.subr.bf16.mxu0 0
  %2158 = vmatpush1.bf16.msra.mxu0 0
  %2159 = vmatprep.subr.bf16.mxu0 0
  %2160 = vmatpush1.bf16.msra.mxu0 0
  %2161 = vmatprep.subr.bf16.mxu0 0
  %2162 = vmatpush1.bf16.msra.mxu0 0
  %2163 = vmatprep.subr.bf16.mxu0 0
  %2164 = vmatpush1.bf16.msra.mxu0 0
  %2165 = vmatprep.subr.bf16.mxu0 0
  %2166 = vmatpush1.bf16.msra.mxu0 0
  %2167 = vmatprep.subr.bf16.mxu0 0
  %2168 = vmatpush1.bf16.msra.mxu0 0
  %2169 = vmatprep.subr.bf16.mxu0 0
  %2170 = vmatpush1.bf16.msra.mxu0 0
  %2171 = vmatprep.subr.bf16.mxu0 0
  %2172 = vmatpush1.bf16.msra.mxu0 0
  %2173 = vmatprep.mubr.bf16.mxu0 0
  %2174 = vmatmul.mubr.bf16.gmra.mrb[0].mxu0 %v2069
  %v2175 = vpop.f32.mrb[0].mxu0
  %v2176 = vadd.f32 %v2091, %v2175
  %v2177 = vpop.f32.mrb[0].mxu0
  %v2178 = vpop.f32.mrb[0].mxu0
  %v2179 = vadd.f32 %v2091, %v2178
  %v2180 = vpop.f32.mrb[0].mxu0
  %2181 = vdwg.mxu0
  %2182 = vst [vmem:[%s14] sm:$0xff] %v2176
  %2183 = vst [vmem:[%s14 + $0x8] sm:$0xff] %v2179
  // Predicated region
  $region58: #{critic_forward.1} parent=0 // pred_check
    _
  $region59: #{critic_forward.1} parent=0 // pred_check_branch
    %2185 = sbr.rel (0) target = $region61
  $region60: #{critic_forward.1} parent=0 // pred_region
    _
  $region61: #{critic_forward.1} parent=0 // pred_fallthru
    _
  // Predicated region
  $region62: #{critic_forward.1} parent=0 // pred_check
    _
  $region63: #{critic_forward.1} parent=0 // pred_check_branch
    %2187 = sbr.rel (0) target = $region65
  $region64: #{critic_forward.1} parent=0 // pred_region
    _
  $region65: #{critic_forward.1} parent=0 // pred_fallthru
    _

</llo_original>
